<compile_context>
chip_gen: v6e
topology: v6e:2x2x1
jax: 0.10.0
libtpu: 0.0.40
codegen_flags: <defaults>
</compile_context>

<pallas_src>
import functools

import jax
import jax.numpy as jnp
from jax import lax
from jax.experimental import pallas as pl
from jax.experimental.pallas import tpu as pltpu

EPS = 1e-5                      # nn.BatchNorm2d default
VMEM_LIMIT = 32 * 1024 * 1024   # safe on v5e/v6e (128 MiB phys) and v7x (64 MiB phys)


def _pick_tile(n, cap=512):
    """Largest power-of-two tile (>=8, <=cap) dividing n, else the full dim."""
    t = cap
    while t >= 8:
        if n % t == 0:
            return t
        t //= 2
    return n


# --------------------------------------------------------------------------- #
# Fused 1x1 conv:  y = [ReLU(a*scale_in + bias_in)] @ W   (+ BN stats of y)
# --------------------------------------------------------------------------- #

def _conv1x1_bn_kernel(a_ref, w_ref, sin_ref, bin_ref,
                       y_ref, psum_ref, psq_ref, acc_ref,
                       *, fuse_input_bn_relu):
    k = pl.program_id(1)
    nk = pl.num_programs(1)

    @pl.when(k == 0)
    def _():
        acc_ref[...] = jnp.zeros_like(acc_ref)

    a = a_ref[...]
    if fuse_input_bn_relu:
        # previous stage's BatchNorm affine + ReLU fused into the A-tile load
        a = jnp.maximum(a * sin_ref[...] + bin_ref[...], 0.0)
    acc_ref[...] += jnp.dot(a.astype(jnp.bfloat16), w_ref[...],
                            preferred_element_type=jnp.float32)

    @pl.when(k == nk - 1)
    def _():
        y = acc_ref[...]
        y_ref[...] = y
        # per-M-tile partial BN statistics, reduced to (C,) outside the kernel
        psum_ref[...] = jnp.sum(y, axis=0, keepdims=True).reshape(1, 1, -1)
        psq_ref[...] = jnp.sum(y * y, axis=0, keepdims=True).reshape(1, 1, -1)


def conv1x1_bn_stats(a, w_bf16, scale_in=None, bias_in=None):
    """a:(M,K) f32, w:(K,N) bf16 -> (y:(M,N) f32, ch_sum:(N,), ch_sqsum:(N,)).

    If scale_in / bias_in are given, computes y = ReLU(a*scale_in + bias_in) @ w,
    i.e. the previous BatchNorm apply + ReLU is fused into the matmul.
    """
    M, K = a.shape
    Kw, N = w_bf16.shape
    assert K == Kw
    tm = _pick_tile(M)
    tk = _pick_tile(K)
    gm, gk = M // tm, K // tk

    fuse = scale_in is not None
    if not fuse:
        scale_in = jnp.ones((K,), jnp.float32)
        bias_in = jnp.zeros((K,), jnp.float32)
    scale_in = scale_in.reshape(1, K).astype(jnp.float32)
    bias_in = bias_in.reshape(1, K).astype(jnp.float32)

    kernel = functools.partial(_conv1x1_bn_kernel, fuse_input_bn_relu=fuse)
    cost = pl.CostEstimate(flops=2 * M * K * N, transcendentals=0,
                           bytes_accessed=4 * M * K + 2 * K * N + 4 * M * N)
    y, psum, psq = pl.pallas_call(
        kernel,
        out_shape=(jax.ShapeDtypeStruct((M, N), jnp.float32),
                   jax.ShapeDtypeStruct((gm, 1, N), jnp.float32),
                   jax.ShapeDtypeStruct((gm, 1, N), jnp.float32)),
        grid=(gm, gk),                                    # reduction axis (K) last
        in_specs=[pl.BlockSpec((tm, tk), lambda i, k: (i, k)),
                  pl.BlockSpec((tk, N), lambda i, k: (k, 0)),
                  pl.BlockSpec((1, tk), lambda i, k: (0, k)),
                  pl.BlockSpec((1, tk), lambda i, k: (0, k))],
        out_specs=(pl.BlockSpec((tm, N), lambda i, k: (i, 0)),
                   pl.BlockSpec((1, 1, N), lambda i, k: (i, 0, 0)),
                   pl.BlockSpec((1, 1, N), lambda i, k: (i, 0, 0))),
        scratch_shapes=[pltpu.VMEM((tm, N), jnp.float32)],
        compiler_params=pltpu.CompilerParams(
            dimension_semantics=("parallel", "arbitrary"),
            vmem_limit_bytes=VMEM_LIMIT),
        cost_estimate=cost,
    )(a.astype(jnp.float32), w_bf16, scale_in, bias_in)
    return y, jnp.sum(psum, axis=(0, 1)), jnp.sum(psq, axis=(0, 1))


# --------------------------------------------------------------------------- #
# Fused 3x3 conv (pad=1): in-kernel 9-tap accumulation over the zero-padded raw
# conv1 output, with bn1 affine+ReLU fused in and bn2 partial stats fused out.
# --------------------------------------------------------------------------- #

def _conv3x3_bn_kernel(y1p_ref, w_ref, s_ref, b_ref,
                       y2_ref, psum_ref, psq_ref,
                       *, stride, H, W, Ho, Wo):
    Hp, Wp = H + 2, W + 2
    Cin = y1p_ref.shape[3]
    Nout = w_ref.shape[2]

    raw = y1p_ref[0]                                     # (Hp,Wp,Cin) pre-BN, zero-padded
    act = jnp.maximum(raw * s_ref[...] + b_ref[...], 0.0)        # bn1 affine + ReLU
    # Padding was applied to the *pre-BN* tensor; re-zero the halo so it matches
    # zero padding of the post-activation map.
    row = lax.broadcasted_iota(jnp.int32, (Hp, Wp, Cin), 0)
    col = lax.broadcasted_iota(jnp.int32, (Hp, Wp, Cin), 1)
    interior = (row >= 1) & (row <= H) & (col >= 1) & (col <= W)
    act = jnp.where(interior, act, 0.0).astype(jnp.bfloat16)

    acc = jnp.zeros((Ho * Wo, Nout), jnp.float32)
    for kh in range(3):                                  # 9 static taps, fully unrolled
        for kw in range(3):
            patch = act[kh:kh + (Ho - 1) * stride + 1:stride,
                        kw:kw + (Wo - 1) * stride + 1:stride, :]
            acc = acc + jnp.dot(patch.reshape(Ho * Wo, Cin),
                                w_ref[kh * 3 + kw],
                                preferred_element_type=jnp.float32)

    y2_ref[...] = acc.reshape(1, Ho, Wo, Nout)
    psum_ref[...] = jnp.sum(acc, axis=0, keepdims=True).reshape(1, 1, -1)
    psq_ref[...] = jnp.sum(acc * acc, axis=0, keepdims=True).reshape(1, 1, -1)


def conv3x3_bn_stats(y1_pad, w_taps_bf16, scale_in, bias_in, stride):
    """y1_pad:(B,H+2,W+2,Cin) raw conv1 output (zero pad=1); w:(9,Cin,Nout) bf16."""
    B, Hp, Wp, Cin = y1_pad.shape
    H, W = Hp - 2, Wp - 2
    Ho = (H - 1) // stride + 1
    Wo = (W - 1) // stride + 1
    Nout = w_taps_bf16.shape[2]
    scale_in = scale_in.reshape(1, Cin).astype(jnp.float32)
    bias_in = bias_in.reshape(1, Cin).astype(jnp.float32)

    kernel = functools.partial(_conv3x3_bn_kernel, stride=stride,
                               H=H, W=W, Ho=Ho, Wo=Wo)
    cost = pl.CostEstimate(
        flops=2 * B * Ho * Wo * 9 * Cin * Nout, transcendentals=0,
        bytes_accessed=4 * B * Hp * Wp * Cin + 2 * 9 * Cin * Nout
        + 4 * B * Ho * Wo * Nout)
    y2, psum, psq = pl.pallas_call(
        kernel,
        out_shape=(jax.ShapeDtypeStruct((B, Ho, Wo, Nout), jnp.float32),
                   jax.ShapeDtypeStruct((B, 1, Nout), jnp.float32),
                   jax.ShapeDtypeStruct((B, 1, Nout), jnp.float32)),
        grid=(B,),
        in_specs=[pl.BlockSpec((1, Hp, Wp, Cin), lambda n: (n, 0, 0, 0)),
                  pl.BlockSpec((9, Cin, Nout), lambda n: (0, 0, 0)),
                  pl.BlockSpec((1, Cin), lambda n: (0, 0)),
                  pl.BlockSpec((1, Cin), lambda n: (0, 0))],
        out_specs=(pl.BlockSpec((1, Ho, Wo, Nout), lambda n: (n, 0, 0, 0)),
                   pl.BlockSpec((1, 1, Nout), lambda n: (n, 0, 0)),
                   pl.BlockSpec((1, 1, Nout), lambda n: (n, 0, 0))),
        compiler_params=pltpu.CompilerParams(
            dimension_semantics=("parallel",),
            vmem_limit_bytes=VMEM_LIMIT),
        cost_estimate=cost,
    )(y1_pad.astype(jnp.float32), w_taps_bf16, scale_in, bias_in)
    return y2, jnp.sum(psum, axis=(0, 1)), jnp.sum(psq, axis=(0, 1))


# --------------------------------------------------------------------------- #
# Fused epilogue:  out = ReLU( (y3*s3 + b3) + (res*s_r + b_r) )
# --------------------------------------------------------------------------- #

def _bn_add_relu_kernel(y_ref, s_ref, b_ref, r_ref, sr_ref, br_ref, o_ref):
    main = y_ref[...] * s_ref[...] + b_ref[...]
    res = r_ref[...] * sr_ref[...] + br_ref[...]
    o_ref[...] = jnp.maximum(main + res, 0.0)


def bn_add_relu(y, scale, bias, res, scale_r, bias_r):
    M, C = y.shape
    tm = _pick_tile(M)
    vec = lambda v: v.reshape(1, C).astype(jnp.float32)
    return pl.pallas_call(
        _bn_add_relu_kernel,
        out_shape=jax.ShapeDtypeStruct((M, C), jnp.float32),
        grid=(M // tm,),
        in_specs=[pl.BlockSpec((tm, C), lambda i: (i, 0)),
                  pl.BlockSpec((1, C), lambda i: (0, 0)),
                  pl.BlockSpec((1, C), lambda i: (0, 0)),
                  pl.BlockSpec((tm, C), lambda i: (i, 0)),
                  pl.BlockSpec((1, C), lambda i: (0, 0)),
                  pl.BlockSpec((1, C), lambda i: (0, 0))],
        out_specs=pl.BlockSpec((tm, C), lambda i: (i, 0)),
        compiler_params=pltpu.CompilerParams(
            dimension_semantics=("parallel",),
            vmem_limit_bytes=VMEM_LIMIT),
    )(y.astype(jnp.float32), vec(scale), vec(bias),
      res.astype(jnp.float32), vec(scale_r), vec(bias_r))


# ------------------------------- glue logic -------------------------------- #

def bn_coeffs(ch_sum, ch_sqsum, count, gamma, beta):
    """Fold training-mode BN (biased batch variance) into per-channel scale/bias."""
    mean = ch_sum / count
    var = jnp.maximum(ch_sqsum / count - mean * mean, 0.0)  # guard tiny cancellation
    scale = gamma.astype(jnp.float32) * lax.rsqrt(var + EPS)
    bias = beta.astype(jnp.float32) - mean * scale
    return scale, bias


def bottleneck_forward(x_nchw, params, stride):
    N, Cin, H, W = x_nchw.shape
    planes = params["w1"].shape[0]
    Cout = params["w3"].shape[0]                          # expansion * planes
    Ho = (H - 1) // stride + 1
    Wo = (W - 1) // stride + 1

    x = jnp.transpose(x_nchw, (0, 2, 3, 1)).astype(jnp.float32)   # NHWC
    x2d = x.reshape(N * H * W, Cin)

    # weights: 1x1 -> (K, N) bf16; 3x3 -> (9, Cin, Nout) bf16 (tap-major kh*3+kw)
    w1 = jnp.transpose(params["w1"][:, :, 0, 0], (1, 0)).astype(jnp.bfloat16)
    O2, I2 = params["w2"].shape[0], params["w2"].shape[1]
    w2 = jnp.transpose(params["w2"], (2, 3, 1, 0)).reshape(9, I2, O2)
    w2 = w2.astype(jnp.bfloat16)
    w3 = jnp.transpose(params["w3"][:, :, 0, 0], (1, 0)).astype(jnp.bfloat16)

    # conv1 (1x1) + bn1 statistics (bn1 affine/ReLU is applied inside conv2)
    y1, s1, q1 = conv1x1_bn_stats(x2d, w1)
    sc1, bi1 = bn_coeffs(s1, q1, N * H * W, params["gamma1"], params["beta1"])

    # conv2 (3x3, stride, pad=1): in-kernel 9-tap accumulation over zero-padded
    # raw y1; bn1 affine+ReLU fused in, bn2 stats fused out. No im2col slab.
    y1_pad = jnp.pad(y1.reshape(N, H, W, planes),
                     ((0, 0), (1, 1), (1, 1), (0, 0)))
    y2_nhwc, s2, q2 = conv3x3_bn_stats(y1_pad, w2, sc1, bi1, stride)
    sc2, bi2 = bn_coeffs(s2, q2, N * Ho * Wo, params["gamma2"], params["beta2"])
    y2 = y2_nhwc.reshape(N * Ho * Wo, planes)

    # conv3 (1x1) with bn2 affine+ReLU fused into its A load, bn3 stats fused out
    y3, s3, q3 = conv1x1_bn_stats(y2, w3, sc2, bi2)
    sc3, bi3 = bn_coeffs(s3, q3, N * Ho * Wo, params["gamma3"], params["beta3"])

    # shortcut branch: projection conv (+ its BN stats), or identity
    if stride != 1 or Cin != Cout:
        ws = jnp.transpose(params["ws"][:, :, 0, 0], (1, 0)).astype(jnp.bfloat16)
        xs = x[:, ::stride, ::stride, :].reshape(N * Ho * Wo, Cin)
        ys, ss, qs = conv1x1_bn_stats(xs, ws)
        scs, bis = bn_coeffs(ss, qs, N * Ho * Wo,
                             params["gamma_s"], params["beta_s"])
    else:
        ys = x2d                                          # identity (Cin == Cout)
        scs = jnp.ones((Cout,), jnp.float32)
        bis = jnp.zeros((Cout,), jnp.float32)

    # fused bn3 + shortcut-BN + residual add + ReLU (shortcut BN output is
    # never materialized in HBM)
    out2d = bn_add_relu(y3, sc3, bi3, ys, scs, bis)
    out = out2d.reshape(N, Ho, Wo, Cout)
    return jnp.transpose(out, (0, 3, 1, 2))               # back to NCHW


# --------------------------- pure-JAX references ---------------------------- #

def ref_bottleneck(x, params, stride, matmul_dtype=jnp.float32):
    """Reference. matmul_dtype=bfloat16 mirrors the kernels' MXU operand
    precision (f32 accumulation / BN math in both cases)."""
    def conv(z, w, s=1, p=0):
        return lax.conv_general_dilated(
            z.astype(matmul_dtype).astype(jnp.float32),
            w.astype(matmul_dtype).astype(jnp.float32),
            (s, s), [(p, p), (p, p)],
            dimension_numbers=("NCHW", "OIHW", "NCHW"),
            precision=lax.Precision.HIGHEST)

    def bn(z, gamma, beta):
        mean = z.mean(axis=(0, 2, 3), keepdims=True)
        var = z.var(axis=(0, 2, 3), keepdims=True)        # biased, BN training mode
        zn = (z - mean) * lax.rsqrt(var + EPS)
        return zn * gamma.reshape(1, -1, 1, 1) + beta.reshape(1, -1, 1, 1)

    out = jax.nn.relu(bn(conv(x, params["w1"]), params["gamma1"], params["beta1"]))
    out = jax.nn.relu(bn(conv(out, params["w2"], s=stride, p=1),
                         params["gamma2"], params["beta2"]))
    out = bn(conv(out, params["w3"]), params["gamma3"], params["beta3"])
    Cout = params["w3"].shape[0]
    if stride != 1 or x.shape[1] != Cout:
        sc = bn(conv(x, params["ws"], s=stride), params["gamma_s"], params["beta_s"])
    else:
        sc = x
    return jax.nn.relu(out + sc)


# ----------------------------------- main ----------------------------------- #

if __name__ == "__main__":
    key = jax.random.PRNGKey(0)
    N, in_planes, H, W = 2, 4, 16, 16
    planes, stride, expansion = 4, 1, 4
    Cout = expansion * planes

    k = jax.random.split(key, 5)
    x = jax.random.normal(k[0], (N, in_planes, H, W), dtype=jnp.float32)
    params = {
        "w1": 0.2 * jax.random.normal(k[1], (planes, in_planes, 1, 1), jnp.float32),
        "w2": 0.2 * jax.random.normal(k[2], (planes, planes, 3, 3), jnp.float32),
        "w3": 0.2 * jax.random.normal(k[3], (Cout, planes, 1, 1), jnp.float32),
        "ws": 0.2 * jax.random.normal(k[4], (Cout, in_planes, 1, 1), jnp.float32),
        # nn.BatchNorm2d defaults: weight=1, bias=0
        "gamma1": jnp.ones((planes,), jnp.float32), "beta1": jnp.zeros((planes,), jnp.float32),
        "gamma2": jnp.ones((planes,), jnp.float32), "beta2": jnp.zeros((planes,), jnp.float32),
        "gamma3": jnp.ones((Cout,), jnp.float32), "beta3": jnp.zeros((Cout,), jnp.float32),
        "gamma_s": jnp.ones((Cout,), jnp.float32), "beta_s": jnp.zeros((Cout,), jnp.float32),
    }

    out = jax.block_until_ready(bottleneck_forward(x, params, stride))
    assert out.shape == (N, Cout, H // stride, W // stride), out.shape

    # Tight check vs a reference matching the kernels' bf16 MXU operand precision.
    ref_match = jax.block_until_ready(
        ref_bottleneck(x, params, stride, matmul_dtype=jnp.bfloat16))
    err_match = float(jnp.max(jnp.abs(out - ref_match)))
    assert err_match < 5e-3, f"mismatch vs bf16-matched reference: {err_match}"

    # Loose sanity bound vs the full-f32 reference (difference bounded by bf16
    # operand rounding, amplified by the BatchNorm normalizations).
    ref_f32 = jax.block_until_ready(ref_bottleneck(x, params, stride))
    err_f32 = float(jnp.max(jnp.abs(out - ref_f32)))
    assert err_f32 < 2e-1, f"mismatch vs f32 reference: {err_f32}"

    print("KERNEL_OK")
</pallas_src>

<mosaic_0001>
module attributes {stable_mosaic.version = 11 : i64} {
  func.func @_conv1x1_bn_kernel(%arg0: i32, %arg1: i32, %arg2: memref<512x4xf32, #tpu.memory_space<vmem>>, %arg3: memref<4x4xbf16, #tpu.memory_space<vmem>>, %arg4: memref<1x4xf32, #tpu.memory_space<vmem>>, %arg5: memref<1x4xf32, #tpu.memory_space<vmem>>, %arg6: memref<512x4xf32, #tpu.memory_space<vmem>>, %arg7: memref<1x1x4xf32, #tpu.memory_space<vmem>>, %arg8: memref<1x1x4xf32, #tpu.memory_space<vmem>>, %arg9: memref<512x4xf32, #tpu.memory_space<vmem>>) attributes {dimension_semantics = [#tpu.dimension_semantics<parallel>, #tpu.dimension_semantics<arbitrary>], iteration_bounds = array<i64: 1, 1>, scalar_prefetch = 0 : i64, scratch_operands = 1 : i64, tpu.core_type = #tpu.core_type<tc>, window_params = [{transform_indices = @transform_0, window_bounds = array<i64: 512, 4>}, {transform_indices = @transform_1, window_bounds = array<i64: 4, 4>}, {transform_indices = @transform_2, window_bounds = array<i64: 1, 4>}, {transform_indices = @transform_3, window_bounds = array<i64: 1, 4>}, {transform_indices = @transform_4, window_bounds = array<i64: 512, 4>}, {transform_indices = @transform_5, window_bounds = array<i64: 1, 1, 4>}, {transform_indices = @transform_6, window_bounds = array<i64: 1, 1, 4>}]} {
    %c0_i32 = arith.constant 0 : i32
    %0 = arith.cmpi eq, %arg1, %c0_i32 : i32
    %1 = arith.extui %0 : i1 to i32
    %c0_i32_0 = arith.constant 0 : i32
    %2 = arith.cmpi ne, %1, %c0_i32_0 : i32
    scf.if %2 {
      %cst_10 = arith.constant 0.000000e+00 : f32
      %13 = vector.broadcast %cst_10 : f32 to vector<512x4xf32>
      %c0_11 = arith.constant 0 : index
      %c0_12 = arith.constant 0 : index
      %14 = vector.load %arg9[%c0_11, %c0_12] : memref<512x4xf32, #tpu.memory_space<vmem>>, vector<512x4xf32>
      tpu.vector_store %arg9[%c0_11, %c0_12], %13 {strides = array<i32>} : memref<512x4xf32, #tpu.memory_space<vmem>>, vector<512x4xf32>,
    } else {
    }
    %c0 = arith.constant 0 : index
    %c0_1 = arith.constant 0 : index
    %3 = vector.load %arg2[%c0, %c0_1] : memref<512x4xf32, #tpu.memory_space<vmem>>, vector<512x4xf32>
    %c0_2 = arith.constant 0 : index
    %c0_3 = arith.constant 0 : index
    %4 = vector.load %arg9[%c0_2, %c0_3] : memref<512x4xf32, #tpu.memory_space<vmem>>, vector<512x4xf32>
    %5 = arith.truncf %3 : vector<512x4xf32> to vector<512x4xbf16>
    %c0_4 = arith.constant 0 : index
    %c0_5 = arith.constant 0 : index
    %6 = vector.load %arg3[%c0_4, %c0_5] : memref<4x4xbf16, #tpu.memory_space<vmem>>, vector<4x4xbf16>
    %cst = arith.constant dense<0.000000e+00> : vector<512x4xf32>
    %7 = tpu.matmul %5, %6, %cst {dimension_numbers = #tpu.dot_dimension_numbers<[1], [0], [0], [1], [0, 0, 1, 1], [], []>} : vector<512x4xbf16>, vector<4x4xbf16>, vector<512x4xf32> -> vector<512x4xf32>
    %8 = arith.addf %4, %7 : vector<512x4xf32>
    %c0_6 = arith.constant 0 : index
    %c0_7 = arith.constant 0 : index
    %9 = vector.load %arg9[%c0_6, %c0_7] : memref<512x4xf32, #tpu.memory_space<vmem>>, vector<512x4xf32>
    tpu.vector_store %arg9[%c0_6, %c0_7], %8 {strides = array<i32>} : memref<512x4xf32, #tpu.memory_space<vmem>>, vector<512x4xf32>,
    %c0_i32_8 = arith.constant 0 : i32
    %10 = arith.cmpi eq, %arg1, %c0_i32_8 : i32
    %11 = arith.extui %10 : i1 to i32
    %c0_i32_9 = arith.constant 0 : i32
    %12 = arith.cmpi ne, %11, %c0_i32_9 : i32
    scf.if %12 {
      %c0_10 = arith.constant 0 : index
      %c0_11 = arith.constant 0 : index
      %13 = vector.load %arg9[%c0_10, %c0_11] : memref<512x4xf32, #tpu.memory_space<vmem>>, vector<512x4xf32>
      %c0_12 = arith.constant 0 : index
      %c0_13 = arith.constant 0 : index
      %14 = vector.load %arg6[%c0_12, %c0_13] : memref<512x4xf32, #tpu.memory_space<vmem>>, vector<512x4xf32>
      tpu.vector_store %arg6[%c0_12, %c0_13], %13 {strides = array<i32>} : memref<512x4xf32, #tpu.memory_space<vmem>>, vector<512x4xf32>,
      %cst_14 = arith.constant dense<0.000000e+00> : vector<4xf32>
      %15 = vector.multi_reduction <add>, %13, %cst_14 [0] : vector<512x4xf32> to vector<4xf32>
      %16 = vector.shape_cast %15 : vector<4xf32> to vector<1x4xf32>
      %17 = vector.shape_cast %16 : vector<1x4xf32> to vector<1x1x4xf32>
      %c0_15 = arith.constant 0 : index
      %c0_16 = arith.constant 0 : index
      %c0_17 = arith.constant 0 : index
      %18 = vector.load %arg7[%c0_15, %c0_16, %c0_17] : memref<1x1x4xf32, #tpu.memory_space<vmem>>, vector<1x1x4xf32>
      tpu.vector_store %arg7[%c0_15, %c0_16, %c0_17], %17 {strides = array<i32>} : memref<1x1x4xf32, #tpu.memory_space<vmem>>, vector<1x1x4xf32>,
      %19 = arith.mulf %13, %13 : vector<512x4xf32>
      %cst_18 = arith.constant dense<0.000000e+00> : vector<4xf32>
      %20 = vector.multi_reduction <add>, %19, %cst_18 [0] : vector<512x4xf32> to vector<4xf32>
      %21 = vector.shape_cast %20 : vector<4xf32> to vector<1x4xf32>
      %22 = vector.shape_cast %21 : vector<1x4xf32> to vector<1x1x4xf32>
      %c0_19 = arith.constant 0 : index
      %c0_20 = arith.constant 0 : index
      %c0_21 = arith.constant 0 : index
      %23 = vector.load %arg8[%c0_19, %c0_20, %c0_21] : memref<1x1x4xf32, #tpu.memory_space<vmem>>, vector<1x1x4xf32>
      tpu.vector_store %arg8[%c0_19, %c0_20, %c0_21], %22 {strides = array<i32>} : memref<1x1x4xf32, #tpu.memory_space<vmem>>, vector<1x1x4xf32>,
    } else {
    }
    return
  }
  func.func @transform_0(%arg0: i32, %arg1: i32) -> (i32, i32) {
    %c0_i32 = arith.constant 0 : i32
    return %arg0, %arg1 : i32, i32
  }
  func.func @transform_1(%arg0: i32, %arg1: i32) -> (i32, i32) {
    %c0_i32 = arith.constant 0 : i32
    %c0_i32_0 = arith.constant 0 : i32
    return %arg1, %c0_i32 : i32, i32
  }
  func.func @transform_2(%arg0: i32, %arg1: i32) -> (i32, i32) {
    %c0_i32 = arith.constant 0 : i32
    %c0_i32_0 = arith.constant 0 : i32
    return %c0_i32, %arg1 : i32, i32
  }
  func.func @transform_3(%arg0: i32, %arg1: i32) -> (i32, i32) {
    %c0_i32 = arith.constant 0 : i32
    %c0_i32_0 = arith.constant 0 : i32
    return %c0_i32, %arg1 : i32, i32
  }
  func.func @transform_4(%arg0: i32, %arg1: i32) -> (i32, i32) {
    %c0_i32 = arith.constant 0 : i32
    %c0_i32_0 = arith.constant 0 : i32
    return %arg0, %c0_i32 : i32, i32
  }
  func.func @transform_5(%arg0: i32, %arg1: i32) -> (i32, i32, i32) {
    %c0_i32 = arith.constant 0 : i32
    %c0_i32_0 = arith.constant 0 : i32
    %c0_i32_1 = arith.constant 0 : i32
    return %arg0, %c0_i32, %c0_i32_0 : i32, i32, i32
  }
  func.func @transform_6(%arg0: i32, %arg1: i32) -> (i32, i32, i32) {
    %c0_i32 = arith.constant 0 : i32
    %c0_i32_0 = arith.constant 0 : i32
    %c0_i32_1 = arith.constant 0 : i32
    return %arg0, %c0_i32, %c0_i32_0 : i32, i32, i32
  }
}

</mosaic_0001>

<llo_original>
// kernel: tpu_custom_call.1
$region0: #{tpu_custom_call.1}
  #allocation0 [shape = 'u32[]', space=smem, size = 0x4, offset = 0x4, fixed_abs, tag = 'smem constant byte address 0x4 - core index']
  #allocation1 [shape = 'u32[144,128]{1,0:T(1,128)}', space=vmem, size = 0x12000, scoped, tag = 'internal scratch']
  #allocation2 [shape = 'f32[512,4]{1,0:T(8,128)}', space=vmem, size = 0x40000, scoped, tag = 'scratch operand']
  %s0 = inlined_call_operand.vmem [shape: f32[512,4], index: 0, kind: input, shape index: {}]
  %s1 = inlined_call_operand.vmem [shape: bf16[4,4], index: 1, kind: input, shape index: {}]
  %s2 = inlined_call_operand.vmem [shape: f32[1,4], index: 2, kind: input, shape index: {}]
  %s3 = inlined_call_operand.vmem [shape: f32[1,4], index: 3, kind: input, shape index: {}]
  %s4 = inlined_call_operand.vmem [shape: f32[512,4], index: 4, kind: output, shape index: {0}]
  %s5 = inlined_call_operand.hbm [shape: f32[1,1,4], index: 5, kind: output, shape index: {1}]
  %s6 = inlined_call_operand.hbm [shape: f32[1,1,4], index: 6, kind: output, shape index: {2}]
  %7 = xla_tuple %s4, %s5, %s6
  %s8 = sld [smem:[#allocation0]]
  $region50: #{tpu_custom_call.1} parent=0
    _
  %s10 = ssub.s32 1, %s8
  %s11 = scalar_select 0, %s10, %s8
  $region1: #{tpu_custom_call.1} parent=0
    #allocation3 [shape = 'u8[512]{0}', space=vmem, size = 0x400, scoped, tag = 'output window, operand 1, single buffered']
    #allocation4 [shape = 's32[1]{0}', space=sflag, size = 0x4, scoped, tag = 'scoped memory for tpu_custom_call.1']
    #allocation5 [shape = 'u8[512]{0}', space=vmem, size = 0x400, scoped, tag = 'output window, operand 2, single buffered']
    #allocation6 [shape = 's32[1]{0}', space=sflag, size = 0x4, scoped, tag = 'scoped memory for tpu_custom_call.1']
    %12 = vsyncpa [#allocation4], 0
    %13 = vsyncpa [#allocation6], 0
    // Predicated region
    $region2: #{tpu_custom_call.1} parent=1 // pred_check
      _
    $region3: #{tpu_custom_call.1} parent=1 // pred_check_branch
      %15 = sbr.rel (0) target = $region5
    $region4: #{tpu_custom_call.1} parent=1 // pred_region
      _
    $region5: #{tpu_custom_call.1} parent=1 // pred_fallthru
      _
    // Predicated region
    $region6: #{tpu_custom_call.1} parent=1 // pred_check
      _
    $region7: #{tpu_custom_call.1} parent=1 // pred_check_branch
      %17 = sbr.rel (0) target = $region9
    $region8: #{tpu_custom_call.1} parent=1 // pred_region
      _
    $region9: #{tpu_custom_call.1} parent=1 // pred_fallthru
      _
    // Predicated region
    $region10: #{tpu_custom_call.1} parent=1 // pred_check
      _
    $region11: #{tpu_custom_call.1} parent=1 // pred_check_branch
      %19 = sbr.rel (0) target = $region13
    $region12: #{tpu_custom_call.1} parent=1 // pred_region
      _
    $region13: #{tpu_custom_call.1} parent=1 // pred_fallthru
      _
    // Predicated region
    $region14: #{tpu_custom_call.1} parent=1 // pred_check
      _
    $region15: #{tpu_custom_call.1} parent=1 // pred_check_branch
      %21 = sbr.rel (0) target = $region17
    $region16: #{tpu_custom_call.1} parent=1 // pred_region
      _
    $region17: #{tpu_custom_call.1} parent=1 // pred_fallthru
      _
    %p23 = scmp.eq.s32.totalorder 0, 0
    // Predicated region
    $region18: #{tpu_custom_call.1} parent=1 // pred_check
      %p24 = pneg %p23
    $region19: #{tpu_custom_call.1} parent=1 // pred_check_branch
      %26 = sbr.rel (%p24) target = $region21
    $region20: #{tpu_custom_call.1} parent=1 // pred_region
      %vm27 = vcmask 31744
      %28 = vst.msk [vmem:[#allocation2] sm:$0xff] %vm27, 0.0
      %29 = vst.msk [vmem:[#allocation2 + $0x8] sm:$0xff] %vm27, 0.0
      %30 = vst.msk [vmem:[#allocation2 + $0x10] sm:$0xff] %vm27, 0.0
      %31 = vst.msk [vmem:[#allocation2 + $0x18] sm:$0xff] %vm27, 0.0
      %32 = vst.msk [vmem:[#allocation2 + $0x20] sm:$0xff] %vm27, 0.0
      %33 = vst.msk [vmem:[#allocation2 + $0x28] sm:$0xff] %vm27, 0.0
      %34 = vst.msk [vmem:[#allocation2 + $0x30] sm:$0xff] %vm27, 0.0
      %35 = vst.msk [vmem:[#allocation2 + $0x38] sm:$0xff] %vm27, 0.0
      %36 = vst.msk [vmem:[#allocation2 + $0x40] sm:$0xff] %vm27, 0.0
      %37 = vst.msk [vmem:[#allocation2 + $0x48] sm:$0xff] %vm27, 0.0
      %38 = vst.msk [vmem:[#allocation2 + $0x50] sm:$0xff] %vm27, 0.0
      %39 = vst.msk [vmem:[#allocation2 + $0x58] sm:$0xff] %vm27, 0.0
      %40 = vst.msk [vmem:[#allocation2 + $0x60] sm:$0xff] %vm27, 0.0
      %41 = vst.msk [vmem:[#allocation2 + $0x68] sm:$0xff] %vm27, 0.0
      %42 = vst.msk [vmem:[#allocation2 + $0x70] sm:$0xff] %vm27, 0.0
      %43 = vst.msk [vmem:[#allocation2 + $0x78] sm:$0xff] %vm27, 0.0
      %44 = vst.msk [vmem:[#allocation2 + $0x80] sm:$0xff] %vm27, 0.0
      %45 = vst.msk [vmem:[#allocation2 + $0x88] sm:$0xff] %vm27, 0.0
      %46 = vst.msk [vmem:[#allocation2 + $0x90] sm:$0xff] %vm27, 0.0
      %47 = vst.msk [vmem:[#allocation2 + $0x98] sm:$0xff] %vm27, 0.0
      %48 = vst.msk [vmem:[#allocation2 + $0xa0] sm:$0xff] %vm27, 0.0
      %49 = vst.msk [vmem:[#allocation2 + $0xa8] sm:$0xff] %vm27, 0.0
      %50 = vst.msk [vmem:[#allocation2 + $0xb0] sm:$0xff] %vm27, 0.0
      %51 = vst.msk [vmem:[#allocation2 + $0xb8] sm:$0xff] %vm27, 0.0
      %52 = vst.msk [vmem:[#allocation2 + $0xc0] sm:$0xff] %vm27, 0.0
      %53 = vst.msk [vmem:[#allocation2 + $0xc8] sm:$0xff] %vm27, 0.0
      %54 = vst.msk [vmem:[#allocation2 + $0xd0] sm:$0xff] %vm27, 0.0
      %55 = vst.msk [vmem:[#allocation2 + $0xd8] sm:$0xff] %vm27, 0.0
      %56 = vst.msk [vmem:[#allocation2 + $0xe0] sm:$0xff] %vm27, 0.0
      %57 = vst.msk [vmem:[#allocation2 + $0xe8] sm:$0xff] %vm27, 0.0
      %58 = vst.msk [vmem:[#allocation2 + $0xf0] sm:$0xff] %vm27, 0.0
      %59 = vst.msk [vmem:[#allocation2 + $0xf8] sm:$0xff] %vm27, 0.0
      %60 = vst.msk [vmem:[#allocation2 + $0x100] sm:$0xff] %vm27, 0.0
      %61 = vst.msk [vmem:[#allocation2 + $0x108] sm:$0xff] %vm27, 0.0
      %62 = vst.msk [vmem:[#allocation2 + $0x110] sm:$0xff] %vm27, 0.0
      %63 = vst.msk [vmem:[#allocation2 + $0x118] sm:$0xff] %vm27, 0.0
      %64 = vst.msk [vmem:[#allocation2 + $0x120] sm:$0xff] %vm27, 0.0
      %65 = vst.msk [vmem:[#allocation2 + $0x128] sm:$0xff] %vm27, 0.0
      %66 = vst.msk [vmem:[#allocation2 + $0x130] sm:$0xff] %vm27, 0.0
      %67 = vst.msk [vmem:[#allocation2 + $0x138] sm:$0xff] %vm27, 0.0
      %68 = vst.msk [vmem:[#allocation2 + $0x140] sm:$0xff] %vm27, 0.0
      %69 = vst.msk [vmem:[#allocation2 + $0x148] sm:$0xff] %vm27, 0.0
      %70 = vst.msk [vmem:[#allocation2 + $0x150] sm:$0xff] %vm27, 0.0
      %71 = vst.msk [vmem:[#allocation2 + $0x158] sm:$0xff] %vm27, 0.0
      %72 = vst.msk [vmem:[#allocation2 + $0x160] sm:$0xff] %vm27, 0.0
      %73 = vst.msk [vmem:[#allocation2 + $0x168] sm:$0xff] %vm27, 0.0
      %74 = vst.msk [vmem:[#allocation2 + $0x170] sm:$0xff] %vm27, 0.0
      %75 = vst.msk [vmem:[#allocation2 + $0x178] sm:$0xff] %vm27, 0.0
      %76 = vst.msk [vmem:[#allocation2 + $0x180] sm:$0xff] %vm27, 0.0
      %77 = vst.msk [vmem:[#allocation2 + $0x188] sm:$0xff] %vm27, 0.0
      %78 = vst.msk [vmem:[#allocation2 + $0x190] sm:$0xff] %vm27, 0.0
      %79 = vst.msk [vmem:[#allocation2 + $0x198] sm:$0xff] %vm27, 0.0
      %80 = vst.msk [vmem:[#allocation2 + $0x1a0] sm:$0xff] %vm27, 0.0
      %81 = vst.msk [vmem:[#allocation2 + $0x1a8] sm:$0xff] %vm27, 0.0
      %82 = vst.msk [vmem:[#allocation2 + $0x1b0] sm:$0xff] %vm27, 0.0
      %83 = vst.msk [vmem:[#allocation2 + $0x1b8] sm:$0xff] %vm27, 0.0
      %84 = vst.msk [vmem:[#allocation2 + $0x1c0] sm:$0xff] %vm27, 0.0
      %85 = vst.msk [vmem:[#allocation2 + $0x1c8] sm:$0xff] %vm27, 0.0
      %86 = vst.msk [vmem:[#allocation2 + $0x1d0] sm:$0xff] %vm27, 0.0
      %87 = vst.msk [vmem:[#allocation2 + $0x1d8] sm:$0xff] %vm27, 0.0
      %88 = vst.msk [vmem:[#allocation2 + $0x1e0] sm:$0xff] %vm27, 0.0
      %89 = vst.msk [vmem:[#allocation2 + $0x1e8] sm:$0xff] %vm27, 0.0
      %90 = vst.msk [vmem:[#allocation2 + $0x1f0] sm:$0xff] %vm27, 0.0
      %91 = vst.msk [vmem:[#allocation2 + $0x1f8] sm:$0xff] %vm27, 0.0
    $region21: #{tpu_custom_call.1} parent=1 // pred_fallthru
      _
    %v92 = vld [vmem:[%s0] sm:$0xff]
    %v93 = vld [vmem:[%s0 + $0x8] sm:$0xff]
    %v94 = vld [vmem:[%s0 + $0x10] sm:$0xff]
    %v95 = vld [vmem:[%s0 + $0x18] sm:$0xff]
    %v96 = vld [vmem:[%s0 + $0x20] sm:$0xff]
    %v97 = vld [vmem:[%s0 + $0x28] sm:$0xff]
    %v98 = vld [vmem:[%s0 + $0x30] sm:$0xff]
    %v99 = vld [vmem:[%s0 + $0x38] sm:$0xff]
    %v100 = vld [vmem:[%s0 + $0x40] sm:$0xff]
    %v101 = vld [vmem:[%s0 + $0x48] sm:$0xff]
    %v102 = vld [vmem:[%s0 + $0x50] sm:$0xff]
    %v103 = vld [vmem:[%s0 + $0x58] sm:$0xff]
    %v104 = vld [vmem:[%s0 + $0x60] sm:$0xff]
    %v105 = vld [vmem:[%s0 + $0x68] sm:$0xff]
    %v106 = vld [vmem:[%s0 + $0x70] sm:$0xff]
    %v107 = vld [vmem:[%s0 + $0x78] sm:$0xff]
    %v108 = vld [vmem:[%s0 + $0x80] sm:$0xff]
    %v109 = vld [vmem:[%s0 + $0x88] sm:$0xff]
    %v110 = vld [vmem:[%s0 + $0x90] sm:$0xff]
    %v111 = vld [vmem:[%s0 + $0x98] sm:$0xff]
    %v112 = vld [vmem:[%s0 + $0xa0] sm:$0xff]
    %v113 = vld [vmem:[%s0 + $0xa8] sm:$0xff]
    %v114 = vld [vmem:[%s0 + $0xb0] sm:$0xff]
    %v115 = vld [vmem:[%s0 + $0xb8] sm:$0xff]
    %v116 = vld [vmem:[%s0 + $0xc0] sm:$0xff]
    %v117 = vld [vmem:[%s0 + $0xc8] sm:$0xff]
    %v118 = vld [vmem:[%s0 + $0xd0] sm:$0xff]
    %v119 = vld [vmem:[%s0 + $0xd8] sm:$0xff]
    %v120 = vld [vmem:[%s0 + $0xe0] sm:$0xff]
    %v121 = vld [vmem:[%s0 + $0xe8] sm:$0xff]
    %v122 = vld [vmem:[%s0 + $0xf0] sm:$0xff]
    %v123 = vld [vmem:[%s0 + $0xf8] sm:$0xff]
    %v124 = vld [vmem:[%s0 + $0x100] sm:$0xff]
    %v125 = vld [vmem:[%s0 + $0x108] sm:$0xff]
    %v126 = vld [vmem:[%s0 + $0x110] sm:$0xff]
    %v127 = vld [vmem:[%s0 + $0x118] sm:$0xff]
    %v128 = vld [vmem:[%s0 + $0x120] sm:$0xff]
    %v129 = vld [vmem:[%s0 + $0x128] sm:$0xff]
    %v130 = vld [vmem:[%s0 + $0x130] sm:$0xff]
    %v131 = vld [vmem:[%s0 + $0x138] sm:$0xff]
    %v132 = vld [vmem:[%s0 + $0x140] sm:$0xff]
    %v133 = vld [vmem:[%s0 + $0x148] sm:$0xff]
    %v134 = vld [vmem:[%s0 + $0x150] sm:$0xff]
    %v135 = vld [vmem:[%s0 + $0x158] sm:$0xff]
    %v136 = vld [vmem:[%s0 + $0x160] sm:$0xff]
    %v137 = vld [vmem:[%s0 + $0x168] sm:$0xff]
    %v138 = vld [vmem:[%s0 + $0x170] sm:$0xff]
    %v139 = vld [vmem:[%s0 + $0x178] sm:$0xff]
    %v140 = vld [vmem:[%s0 + $0x180] sm:$0xff]
    %v141 = vld [vmem:[%s0 + $0x188] sm:$0xff]
    %v142 = vld [vmem:[%s0 + $0x190] sm:$0xff]
    %v143 = vld [vmem:[%s0 + $0x198] sm:$0xff]
    %v144 = vld [vmem:[%s0 + $0x1a0] sm:$0xff]
    %v145 = vld [vmem:[%s0 + $0x1a8] sm:$0xff]
    %v146 = vld [vmem:[%s0 + $0x1b0] sm:$0xff]
    %v147 = vld [vmem:[%s0 + $0x1b8] sm:$0xff]
    %v148 = vld [vmem:[%s0 + $0x1c0] sm:$0xff]
    %v149 = vld [vmem:[%s0 + $0x1c8] sm:$0xff]
    %v150 = vld [vmem:[%s0 + $0x1d0] sm:$0xff]
    %v151 = vld [vmem:[%s0 + $0x1d8] sm:$0xff]
    %v152 = vld [vmem:[%s0 + $0x1e0] sm:$0xff]
    %v153 = vld [vmem:[%s0 + $0x1e8] sm:$0xff]
    %v154 = vld [vmem:[%s0 + $0x1f0] sm:$0xff]
    %v155 = vld [vmem:[%s0 + $0x1f8] sm:$0xff]
    %v156 = vld [vmem:[#allocation2] sm:$0xff]
    %v157 = vld [vmem:[#allocation2 + $0x8] sm:$0xff]
    %v158 = vld [vmem:[#allocation2 + $0x10] sm:$0xff]
    %v159 = vld [vmem:[#allocation2 + $0x18] sm:$0xff]
    %v160 = vld [vmem:[#allocation2 + $0x20] sm:$0xff]
    %v161 = vld [vmem:[#allocation2 + $0x28] sm:$0xff]
    %v162 = vld [vmem:[#allocation2 + $0x30] sm:$0xff]
    %v163 = vld [vmem:[#allocation2 + $0x38] sm:$0xff]
    %v164 = vld [vmem:[#allocation2 + $0x40] sm:$0xff]
    %v165 = vld [vmem:[#allocation2 + $0x48] sm:$0xff]
    %v166 = vld [vmem:[#allocation2 + $0x50] sm:$0xff]
    %v167 = vld [vmem:[#allocation2 + $0x58] sm:$0xff]
    %v168 = vld [vmem:[#allocation2 + $0x60] sm:$0xff]
    %v169 = vld [vmem:[#allocation2 + $0x68] sm:$0xff]
    %v170 = vld [vmem:[#allocation2 + $0x70] sm:$0xff]
    %v171 = vld [vmem:[#allocation2 + $0x78] sm:$0xff]
    %v172 = vld [vmem:[#allocation2 + $0x80] sm:$0xff]
    %v173 = vld [vmem:[#allocation2 + $0x88] sm:$0xff]
    %v174 = vld [vmem:[#allocation2 + $0x90] sm:$0xff]
    %v175 = vld [vmem:[#allocation2 + $0x98] sm:$0xff]
    %v176 = vld [vmem:[#allocation2 + $0xa0] sm:$0xff]
    %v177 = vld [vmem:[#allocation2 + $0xa8] sm:$0xff]
    %v178 = vld [vmem:[#allocation2 + $0xb0] sm:$0xff]
    %v179 = vld [vmem:[#allocation2 + $0xb8] sm:$0xff]
    %v180 = vld [vmem:[#allocation2 + $0xc0] sm:$0xff]
    %v181 = vld [vmem:[#allocation2 + $0xc8] sm:$0xff]
    %v182 = vld [vmem:[#allocation2 + $0xd0] sm:$0xff]
    %v183 = vld [vmem:[#allocation2 + $0xd8] sm:$0xff]
    %v184 = vld [vmem:[#allocation2 + $0xe0] sm:$0xff]
    %v185 = vld [vmem:[#allocation2 + $0xe8] sm:$0xff]
    %v186 = vld [vmem:[#allocation2 + $0xf0] sm:$0xff]
    %v187 = vld [vmem:[#allocation2 + $0xf8] sm:$0xff]
    %v188 = vld [vmem:[#allocation2 + $0x100] sm:$0xff]
    %v189 = vld [vmem:[#allocation2 + $0x108] sm:$0xff]
    %v190 = vld [vmem:[#allocation2 + $0x110] sm:$0xff]
    %v191 = vld [vmem:[#allocation2 + $0x118] sm:$0xff]
    %v192 = vld [vmem:[#allocation2 + $0x120] sm:$0xff]
    %v193 = vld [vmem:[#allocation2 + $0x128] sm:$0xff]
    %v194 = vld [vmem:[#allocation2 + $0x130] sm:$0xff]
    %v195 = vld [vmem:[#allocation2 + $0x138] sm:$0xff]
    %v196 = vld [vmem:[#allocation2 + $0x140] sm:$0xff]
    %v197 = vld [vmem:[#allocation2 + $0x148] sm:$0xff]
    %v198 = vld [vmem:[#allocation2 + $0x150] sm:$0xff]
    %v199 = vld [vmem:[#allocation2 + $0x158] sm:$0xff]
    %v200 = vld [vmem:[#allocation2 + $0x160] sm:$0xff]
    %v201 = vld [vmem:[#allocation2 + $0x168] sm:$0xff]
    %v202 = vld [vmem:[#allocation2 + $0x170] sm:$0xff]
    %v203 = vld [vmem:[#allocation2 + $0x178] sm:$0xff]
    %v204 = vld [vmem:[#allocation2 + $0x180] sm:$0xff]
    %v205 = vld [vmem:[#allocation2 + $0x188] sm:$0xff]
    %v206 = vld [vmem:[#allocation2 + $0x190] sm:$0xff]
    %v207 = vld [vmem:[#allocation2 + $0x198] sm:$0xff]
    %v208 = vld [vmem:[#allocation2 + $0x1a0] sm:$0xff]
    %v209 = vld [vmem:[#allocation2 + $0x1a8] sm:$0xff]
    %v210 = vld [vmem:[#allocation2 + $0x1b0] sm:$0xff]
    %v211 = vld [vmem:[#allocation2 + $0x1b8] sm:$0xff]
    %v212 = vld [vmem:[#allocation2 + $0x1c0] sm:$0xff]
    %v213 = vld [vmem:[#allocation2 + $0x1c8] sm:$0xff]
    %v214 = vld [vmem:[#allocation2 + $0x1d0] sm:$0xff]
    %v215 = vld [vmem:[#allocation2 + $0x1d8] sm:$0xff]
    %v216 = vld [vmem:[#allocation2 + $0x1e0] sm:$0xff]
    %v217 = vld [vmem:[#allocation2 + $0x1e8] sm:$0xff]
    %v218 = vld [vmem:[#allocation2 + $0x1f0] sm:$0xff]
    %v219 = vld [vmem:[#allocation2 + $0x1f8] sm:$0xff]
    %v220 = vpack.c.bf16 %v93, %v92
    %v221 = vpack.c.bf16 %v95, %v94
    %v222 = vpack.c.bf16 %v97, %v96
    %v223 = vpack.c.bf16 %v99, %v98
    %v224 = vpack.c.bf16 %v101, %v100
    %v225 = vpack.c.bf16 %v103, %v102
    %v226 = vpack.c.bf16 %v105, %v104
    %v227 = vpack.c.bf16 %v107, %v106
    %v228 = vpack.c.bf16 %v109, %v108
    %v229 = vpack.c.bf16 %v111, %v110
    %v230 = vpack.c.bf16 %v113, %v112
    %v231 = vpack.c.bf16 %v115, %v114
    %v232 = vpack.c.bf16 %v117, %v116
    %v233 = vpack.c.bf16 %v119, %v118
    %v234 = vpack.c.bf16 %v121, %v120
    %v235 = vpack.c.bf16 %v123, %v122
    %v236 = vpack.c.bf16 %v125, %v124
    %v237 = vpack.c.bf16 %v127, %v126
    %v238 = vpack.c.bf16 %v129, %v128
    %v239 = vpack.c.bf16 %v131, %v130
    %v240 = vpack.c.bf16 %v133, %v132
    %v241 = vpack.c.bf16 %v135, %v134
    %v242 = vpack.c.bf16 %v137, %v136
    %v243 = vpack.c.bf16 %v139, %v138
    %v244 = vpack.c.bf16 %v141, %v140
    %v245 = vpack.c.bf16 %v143, %v142
    %v246 = vpack.c.bf16 %v145, %v144
    %v247 = vpack.c.bf16 %v147, %v146
    %v248 = vpack.c.bf16 %v149, %v148
    %v249 = vpack.c.bf16 %v151, %v150
    %v250 = vpack.c.bf16 %v153, %v152
    %v251 = vpack.c.bf16 %v155, %v154
    %v252 = vld [vmem:[%s1] sm:$0x3]
    %vm253 = vcmask 31744
    %v255 = vsel %vm253, %v220, 0
    %v258 = vsel %vm253, %v221, 0
    %v261 = vsel %vm253, %v222, 0
    %v264 = vsel %vm253, %v223, 0
    %v267 = vsel %vm253, %v224, 0
    %v270 = vsel %vm253, %v225, 0
    %v273 = vsel %vm253, %v226, 0
    %v276 = vsel %vm253, %v227, 0
    %v279 = vsel %vm253, %v228, 0
    %v282 = vsel %vm253, %v229, 0
    %v285 = vsel %vm253, %v230, 0
    %v288 = vsel %vm253, %v231, 0
    %v291 = vsel %vm253, %v232, 0
    %v294 = vsel %vm253, %v233, 0
    %v297 = vsel %vm253, %v234, 0
    %v300 = vsel %vm253, %v235, 0
    %v303 = vsel %vm253, %v236, 0
    %v306 = vsel %vm253, %v237, 0
    %v309 = vsel %vm253, %v238, 0
    %v312 = vsel %vm253, %v239, 0
    %v315 = vsel %vm253, %v240, 0
    %v318 = vsel %vm253, %v241, 0
    %v321 = vsel %vm253, %v242, 0
    %v324 = vsel %vm253, %v243, 0
    %v327 = vsel %vm253, %v244, 0
    %v330 = vsel %vm253, %v245, 0
    %v333 = vsel %vm253, %v246, 0
    %v336 = vsel %vm253, %v247, 0
    %v339 = vsel %vm253, %v248, 0
    %v342 = vsel %vm253, %v249, 0
    %v345 = vsel %vm253, %v250, 0
    %v348 = vsel %vm253, %v251, 0
    %vm350 = vcmask 1041408
    %v352 = vsel %vm350, %v252, 0
    %354 = vmatprep.subr.bf16.mxu0 0
    %355 = vmatpush1.bf16.msra.mxu0 0
    %356 = vmatprep.subr.bf16.mxu0 0
    %357 = vmatpush1.bf16.msra.mxu0 0
    %358 = vmatprep.subr.bf16.mxu0 0
    %359 = vmatpush1.bf16.msra.mxu0 0
    %360 = vmatprep.subr.bf16.mxu0 0
    %361 = vmatpush1.bf16.msra.mxu0 0
    %362 = vmatprep.subr.bf16.mxu0 0
    %363 = vmatpush1.bf16.msra.mxu0 0
    %364 = vmatprep.subr.bf16.mxu0 0
    %365 = vmatpush1.bf16.msra.mxu0 0
    %366 = vmatprep.subr.bf16.mxu0 0
    %367 = vmatpush1.bf16.msra.mxu0 0
    %368 = vmatprep.subr.bf16.mxu0 0
    %369 = vmatpush1.bf16.msra.mxu0 %v352
    %370 = vmatprep.subr.bf16.mxu0 0
    %371 = vmatpush2.bf16.msra.mxu0 0
    %372 = vmatprep.subr.bf16.mxu0 0
    %373 = vmatpush2.bf16.msra.mxu0 0
    %374 = vmatprep.subr.bf16.mxu0 0
    %375 = vmatpush2.bf16.msra.mxu0 0
    %376 = vmatprep.subr.bf16.mxu0 0
    %377 = vmatpush2.bf16.msra.mxu0 0
    %378 = vmatprep.subr.bf16.mxu0 0
    %379 = vmatpush2.bf16.msra.mxu0 0
    %380 = vmatprep.subr.bf16.mxu0 0
    %381 = vmatpush2.bf16.msra.mxu0 0
    %382 = vmatprep.subr.bf16.mxu0 0
    %383 = vmatpush2.bf16.msra.mxu0 0
    %384 = vmatprep.subr.bf16.mxu0 0
    %385 = vmatpush2.bf16.msra.mxu0 0
    %386 = vmatprep.mubr.bf16.mxu0 0
    %387 = vmatmul.mubr.bf16.gmra.mxu0 %v255
    %v388 = vpop.f32.mrf.mxu0
    %v389 = vadd.f32 0.0, %v388
    %v390 = vpop.f32.mrf.mxu0
    %v391 = vpop.f32.mrf.mxu0
    %v392 = vadd.f32 0.0, %v391
    %v393 = vpop.f32.mrf.mxu0
    %394 = vmatprep.mubr.bf16.mxu0 0
    %395 = vmatmul.mubr.bf16.gmra.mxu0 %v258
    %v396 = vpop.f32.mrf.mxu0
    %v397 = vadd.f32 0.0, %v396
    %v398 = vpop.f32.mrf.mxu0
    %v399 = vpop.f32.mrf.mxu0
    %v400 = vadd.f32 0.0, %v399
    %v401 = vpop.f32.mrf.mxu0
    %402 = vmatprep.mubr.bf16.mxu0 0
    %403 = vmatmul.mubr.bf16.gmra.mxu0 %v261
    %v404 = vpop.f32.mrf.mxu0
    %v405 = vadd.f32 0.0, %v404
    %v406 = vpop.f32.mrf.mxu0
    %v407 = vpop.f32.mrf.mxu0
    %v408 = vadd.f32 0.0, %v407
    %v409 = vpop.f32.mrf.mxu0
    %410 = vmatprep.mubr.bf16.mxu0 0
    %411 = vmatmul.mubr.bf16.gmra.mxu0 %v264
    %v412 = vpop.f32.mrf.mxu0
    %v413 = vadd.f32 0.0, %v412
    %v414 = vpop.f32.mrf.mxu0
    %v415 = vpop.f32.mrf.mxu0
    %v416 = vadd.f32 0.0, %v415
    %v417 = vpop.f32.mrf.mxu0
    %418 = vmatprep.mubr.bf16.mxu0 0
    %419 = vmatmul.mubr.bf16.gmra.mxu0 %v267
    %v420 = vpop.f32.mrf.mxu0
    %v421 = vadd.f32 0.0, %v420
    %v422 = vpop.f32.mrf.mxu0
    %v423 = vpop.f32.mrf.mxu0
    %v424 = vadd.f32 0.0, %v423
    %v425 = vpop.f32.mrf.mxu0
    %426 = vmatprep.mubr.bf16.mxu0 0
    %427 = vmatmul.mubr.bf16.gmra.mxu0 %v270
    %v428 = vpop.f32.mrf.mxu0
    %v429 = vadd.f32 0.0, %v428
    %v430 = vpop.f32.mrf.mxu0
    %v431 = vpop.f32.mrf.mxu0
    %v432 = vadd.f32 0.0, %v431
    %v433 = vpop.f32.mrf.mxu0
    %434 = vmatprep.mubr.bf16.mxu0 0
    %435 = vmatmul.mubr.bf16.gmra.mxu0 %v273
    %v436 = vpop.f32.mrf.mxu0
    %v437 = vadd.f32 0.0, %v436
    %v438 = vpop.f32.mrf.mxu0
    %v439 = vpop.f32.mrf.mxu0
    %v440 = vadd.f32 0.0, %v439
    %v441 = vpop.f32.mrf.mxu0
    %442 = vmatprep.mubr.bf16.mxu0 0
    %443 = vmatmul.mubr.bf16.gmra.mxu0 %v276
    %v444 = vpop.f32.mrf.mxu0
    %v445 = vadd.f32 0.0, %v444
    %v446 = vpop.f32.mrf.mxu0
    %v447 = vpop.f32.mrf.mxu0
    %v448 = vadd.f32 0.0, %v447
    %v449 = vpop.f32.mrf.mxu0
    %450 = vmatprep.mubr.bf16.mxu0 0
    %451 = vmatmul.mubr.bf16.gmra.mxu0 %v279
    %v452 = vpop.f32.mrf.mxu0
    %v453 = vadd.f32 0.0, %v452
    %v454 = vpop.f32.mrf.mxu0
    %v455 = vpop.f32.mrf.mxu0
    %v456 = vadd.f32 0.0, %v455
    %v457 = vpop.f32.mrf.mxu0
    %458 = vmatprep.mubr.bf16.mxu0 0
    %459 = vmatmul.mubr.bf16.gmra.mxu0 %v282
    %v460 = vpop.f32.mrf.mxu0
    %v461 = vadd.f32 0.0, %v460
    %v462 = vpop.f32.mrf.mxu0
    %v463 = vpop.f32.mrf.mxu0
    %v464 = vadd.f32 0.0, %v463
    %v465 = vpop.f32.mrf.mxu0
    %466 = vmatprep.mubr.bf16.mxu0 0
    %467 = vmatmul.mubr.bf16.gmra.mxu0 %v285
    %v468 = vpop.f32.mrf.mxu0
    %v469 = vadd.f32 0.0, %v468
    %v470 = vpop.f32.mrf.mxu0
    %v471 = vpop.f32.mrf.mxu0
    %v472 = vadd.f32 0.0, %v471
    %v473 = vpop.f32.mrf.mxu0
    %474 = vmatprep.mubr.bf16.mxu0 0
    %475 = vmatmul.mubr.bf16.gmra.mxu0 %v288
    %v476 = vpop.f32.mrf.mxu0
    %v477 = vadd.f32 0.0, %v476
    %v478 = vpop.f32.mrf.mxu0
    %v479 = vpop.f32.mrf.mxu0
    %v480 = vadd.f32 0.0, %v479
    %v481 = vpop.f32.mrf.mxu0
    %482 = vmatprep.mubr.bf16.mxu0 0
    %483 = vmatmul.mubr.bf16.gmra.mxu0 %v291
    %v484 = vpop.f32.mrf.mxu0
    %v485 = vadd.f32 0.0, %v484
    %v486 = vpop.f32.mrf.mxu0
    %v487 = vpop.f32.mrf.mxu0
    %v488 = vadd.f32 0.0, %v487
    %v489 = vpop.f32.mrf.mxu0
    %490 = vmatprep.mubr.bf16.mxu0 0
    %491 = vmatmul.mubr.bf16.gmra.mxu0 %v294
    %v492 = vpop.f32.mrf.mxu0
    %v493 = vadd.f32 0.0, %v492
    %v494 = vpop.f32.mrf.mxu0
    %v495 = vpop.f32.mrf.mxu0
    %v496 = vadd.f32 0.0, %v495
    %v497 = vpop.f32.mrf.mxu0
    %498 = vmatprep.mubr.bf16.mxu0 0
    %499 = vmatmul.mubr.bf16.gmra.mxu0 %v297
    %v500 = vpop.f32.mrf.mxu0
    %v501 = vadd.f32 0.0, %v500
    %v502 = vpop.f32.mrf.mxu0
    %v503 = vpop.f32.mrf.mxu0
    %v504 = vadd.f32 0.0, %v503
    %v505 = vpop.f32.mrf.mxu0
    %506 = vmatprep.mubr.bf16.mxu0 0
    %507 = vmatmul.mubr.bf16.gmra.mxu0 %v300
    %v508 = vpop.f32.mrf.mxu0
    %v509 = vadd.f32 0.0, %v508
    %v510 = vpop.f32.mrf.mxu0
    %v511 = vpop.f32.mrf.mxu0
    %v512 = vadd.f32 0.0, %v511
    %v513 = vpop.f32.mrf.mxu0
    %514 = vmatprep.mubr.bf16.mxu0 0
    %515 = vmatmul.mubr.bf16.gmra.mxu0 %v303
    %v516 = vpop.f32.mrf.mxu0
    %v517 = vadd.f32 0.0, %v516
    %v518 = vpop.f32.mrf.mxu0
    %v519 = vpop.f32.mrf.mxu0
    %v520 = vadd.f32 0.0, %v519
    %v521 = vpop.f32.mrf.mxu0
    %522 = vmatprep.mubr.bf16.mxu0 0
    %523 = vmatmul.mubr.bf16.gmra.mxu0 %v306
    %v524 = vpop.f32.mrf.mxu0
    %v525 = vadd.f32 0.0, %v524
    %v526 = vpop.f32.mrf.mxu0
    %v527 = vpop.f32.mrf.mxu0
    %v528 = vadd.f32 0.0, %v527
    %v529 = vpop.f32.mrf.mxu0
    %530 = vmatprep.mubr.bf16.mxu0 0
    %531 = vmatmul.mubr.bf16.gmra.mxu0 %v309
    %v532 = vpop.f32.mrf.mxu0
    %v533 = vadd.f32 0.0, %v532
    %v534 = vpop.f32.mrf.mxu0
    %v535 = vpop.f32.mrf.mxu0
    %v536 = vadd.f32 0.0, %v535
    %v537 = vpop.f32.mrf.mxu0
    %538 = vmatprep.mubr.bf16.mxu0 0
    %539 = vmatmul.mubr.bf16.gmra.mxu0 %v312
    %v540 = vpop.f32.mrf.mxu0
    %v541 = vadd.f32 0.0, %v540
    %v542 = vpop.f32.mrf.mxu0
    %v543 = vpop.f32.mrf.mxu0
    %v544 = vadd.f32 0.0, %v543
    %v545 = vpop.f32.mrf.mxu0
    %546 = vmatprep.mubr.bf16.mxu0 0
    %547 = vmatmul.mubr.bf16.gmra.mxu0 %v315
    %v548 = vpop.f32.mrf.mxu0
    %v549 = vadd.f32 0.0, %v548
    %v550 = vpop.f32.mrf.mxu0
    %v551 = vpop.f32.mrf.mxu0
    %v552 = vadd.f32 0.0, %v551
    %v553 = vpop.f32.mrf.mxu0
    %554 = vmatprep.mubr.bf16.mxu0 0
    %555 = vmatmul.mubr.bf16.gmra.mxu0 %v318
    %v556 = vpop.f32.mrf.mxu0
    %v557 = vadd.f32 0.0, %v556
    %v558 = vpop.f32.mrf.mxu0
    %v559 = vpop.f32.mrf.mxu0
    %v560 = vadd.f32 0.0, %v559
    %v561 = vpop.f32.mrf.mxu0
    %562 = vmatprep.mubr.bf16.mxu0 0
    %563 = vmatmul.mubr.bf16.gmra.mxu0 %v321
    %v564 = vpop.f32.mrf.mxu0
    %v565 = vadd.f32 0.0, %v564
    %v566 = vpop.f32.mrf.mxu0
    %v567 = vpop.f32.mrf.mxu0
    %v568 = vadd.f32 0.0, %v567
    %v569 = vpop.f32.mrf.mxu0
    %570 = vmatprep.mubr.bf16.mxu0 0
    %571 = vmatmul.mubr.bf16.gmra.mxu0 %v324
    %v572 = vpop.f32.mrf.mxu0
    %v573 = vadd.f32 0.0, %v572
    %v574 = vpop.f32.mrf.mxu0
    %v575 = vpop.f32.mrf.mxu0
    %v576 = vadd.f32 0.0, %v575
    %v577 = vpop.f32.mrf.mxu0
    %578 = vmatprep.mubr.bf16.mxu0 0
    %579 = vmatmul.mubr.bf16.gmra.mxu0 %v327
    %v580 = vpop.f32.mrf.mxu0
    %v581 = vadd.f32 0.0, %v580
    %v582 = vpop.f32.mrf.mxu0
    %v583 = vpop.f32.mrf.mxu0
    %v584 = vadd.f32 0.0, %v583
    %v585 = vpop.f32.mrf.mxu0
    %586 = vmatprep.mubr.bf16.mxu0 0
    %587 = vmatmul.mubr.bf16.gmra.mxu0 %v330
    %v588 = vpop.f32.mrf.mxu0
    %v589 = vadd.f32 0.0, %v588
    %v590 = vpop.f32.mrf.mxu0
    %v591 = vpop.f32.mrf.mxu0
    %v592 = vadd.f32 0.0, %v591
    %v593 = vpop.f32.mrf.mxu0
    %594 = vmatprep.mubr.bf16.mxu0 0
    %595 = vmatmul.mubr.bf16.gmra.mxu0 %v333
    %v596 = vpop.f32.mrf.mxu0
    %v597 = vadd.f32 0.0, %v596
    %v598 = vpop.f32.mrf.mxu0
    %v599 = vpop.f32.mrf.mxu0
    %v600 = vadd.f32 0.0, %v599
    %v601 = vpop.f32.mrf.mxu0
    %602 = vmatprep.mubr.bf16.mxu0 0
    %603 = vmatmul.mubr.bf16.gmra.mxu0 %v336
    %v604 = vpop.f32.mrf.mxu0
    %v605 = vadd.f32 0.0, %v604
    %v606 = vpop.f32.mrf.mxu0
    %v607 = vpop.f32.mrf.mxu0
    %v608 = vadd.f32 0.0, %v607
    %v609 = vpop.f32.mrf.mxu0
    %610 = vmatprep.mubr.bf16.mxu0 0
    %611 = vmatmul.mubr.bf16.gmra.mxu0 %v339
    %v612 = vpop.f32.mrf.mxu0
    %v613 = vadd.f32 0.0, %v612
    %v614 = vpop.f32.mrf.mxu0
    %v615 = vpop.f32.mrf.mxu0
    %v616 = vadd.f32 0.0, %v615
    %v617 = vpop.f32.mrf.mxu0
    %618 = vmatprep.mubr.bf16.mxu0 0
    %619 = vmatmul.mubr.bf16.gmra.mxu0 %v342
    %v620 = vpop.f32.mrf.mxu0
    %v621 = vadd.f32 0.0, %v620
    %v622 = vpop.f32.mrf.mxu0
    %v623 = vpop.f32.mrf.mxu0
    %v624 = vadd.f32 0.0, %v623
    %v625 = vpop.f32.mrf.mxu0
    %626 = vmatprep.mubr.bf16.mxu0 0
    %627 = vmatmul.mubr.bf16.gmra.mxu0 %v345
    %v628 = vpop.f32.mrf.mxu0
    %v629 = vadd.f32 0.0, %v628
    %v630 = vpop.f32.mrf.mxu0
    %v631 = vpop.f32.mrf.mxu0
    %v632 = vadd.f32 0.0, %v631
    %v633 = vpop.f32.mrf.mxu0
    %634 = vmatprep.mubr.bf16.mxu0 0
    %635 = vmatmul.mubr.bf16.gmra.mxu0 %v348
    %v636 = vpop.f32.mrf.mxu0
    %v637 = vadd.f32 0.0, %v636
    %v638 = vpop.f32.mrf.mxu0
    %v639 = vpop.f32.mrf.mxu0
    %v640 = vadd.f32 0.0, %v639
    %v641 = vpop.f32.mrf.mxu0
    %642 = vdwg.mxu0
    %v643 = vadd.f32 %v156, %v389
    %v644 = vadd.f32 %v157, %v392
    %v645 = vadd.f32 %v158, %v397
    %v646 = vadd.f32 %v159, %v400
    %v647 = vadd.f32 %v160, %v405
    %v648 = vadd.f32 %v161, %v408
    %v649 = vadd.f32 %v162, %v413
    %v650 = vadd.f32 %v163, %v416
    %v651 = vadd.f32 %v164, %v421
    %v652 = vadd.f32 %v165, %v424
    %v653 = vadd.f32 %v166, %v429
    %v654 = vadd.f32 %v167, %v432
    %v655 = vadd.f32 %v168, %v437
    %v656 = vadd.f32 %v169, %v440
    %v657 = vadd.f32 %v170, %v445
    %v658 = vadd.f32 %v171, %v448
    %v659 = vadd.f32 %v172, %v453
    %v660 = vadd.f32 %v173, %v456
    %v661 = vadd.f32 %v174, %v461
    %v662 = vadd.f32 %v175, %v464
    %v663 = vadd.f32 %v176, %v469
    %v664 = vadd.f32 %v177, %v472
    %v665 = vadd.f32 %v178, %v477
    %v666 = vadd.f32 %v179, %v480
    %v667 = vadd.f32 %v180, %v485
    %v668 = vadd.f32 %v181, %v488
    %v669 = vadd.f32 %v182, %v493
    %v670 = vadd.f32 %v183, %v496
    %v671 = vadd.f32 %v184, %v501
    %v672 = vadd.f32 %v185, %v504
    %v673 = vadd.f32 %v186, %v509
    %v674 = vadd.f32 %v187, %v512
    %v675 = vadd.f32 %v188, %v517
    %v676 = vadd.f32 %v189, %v520
    %v677 = vadd.f32 %v190, %v525
    %v678 = vadd.f32 %v191, %v528
    %v679 = vadd.f32 %v192, %v533
    %v680 = vadd.f32 %v193, %v536
    %v681 = vadd.f32 %v194, %v541
    %v682 = vadd.f32 %v195, %v544
    %v683 = vadd.f32 %v196, %v549
    %v684 = vadd.f32 %v197, %v552
    %v685 = vadd.f32 %v198, %v557
    %v686 = vadd.f32 %v199, %v560
    %v687 = vadd.f32 %v200, %v565
    %v688 = vadd.f32 %v201, %v568
    %v689 = vadd.f32 %v202, %v573
    %v690 = vadd.f32 %v203, %v576
    %v691 = vadd.f32 %v204, %v581
    %v692 = vadd.f32 %v205, %v584
    %v693 = vadd.f32 %v206, %v589
    %v694 = vadd.f32 %v207, %v592
    %v695 = vadd.f32 %v208, %v597
    %v696 = vadd.f32 %v209, %v600
    %v697 = vadd.f32 %v210, %v605
    %v698 = vadd.f32 %v211, %v608
    %v699 = vadd.f32 %v212, %v613
    %v700 = vadd.f32 %v213, %v616
    %v701 = vadd.f32 %v214, %v621
    %v702 = vadd.f32 %v215, %v624
    %v703 = vadd.f32 %v216, %v629
    %v704 = vadd.f32 %v217, %v632
    %v705 = vadd.f32 %v218, %v637
    %v706 = vadd.f32 %v219, %v640
    %707 = vst.msk [vmem:[#allocation2] sm:$0xff] %vm253, %v643
    %708 = vst.msk [vmem:[#allocation2 + $0x8] sm:$0xff] %vm253, %v644
    %709 = vst.msk [vmem:[#allocation2 + $0x10] sm:$0xff] %vm253, %v645
    %710 = vst.msk [vmem:[#allocation2 + $0x18] sm:$0xff] %vm253, %v646
    %711 = vst.msk [vmem:[#allocation2 + $0x20] sm:$0xff] %vm253, %v647
    %712 = vst.msk [vmem:[#allocation2 + $0x28] sm:$0xff] %vm253, %v648
    %713 = vst.msk [vmem:[#allocation2 + $0x30] sm:$0xff] %vm253, %v649
    %714 = vst.msk [vmem:[#allocation2 + $0x38] sm:$0xff] %vm253, %v650
    %715 = vst.msk [vmem:[#allocation2 + $0x40] sm:$0xff] %vm253, %v651
    %716 = vst.msk [vmem:[#allocation2 + $0x48] sm:$0xff] %vm253, %v652
    %717 = vst.msk [vmem:[#allocation2 + $0x50] sm:$0xff] %vm253, %v653
    %718 = vst.msk [vmem:[#allocation2 + $0x58] sm:$0xff] %vm253, %v654
    %719 = vst.msk [vmem:[#allocation2 + $0x60] sm:$0xff] %vm253, %v655
    %720 = vst.msk [vmem:[#allocation2 + $0x68] sm:$0xff] %vm253, %v656
    %721 = vst.msk [vmem:[#allocation2 + $0x70] sm:$0xff] %vm253, %v657
    %722 = vst.msk [vmem:[#allocation2 + $0x78] sm:$0xff] %vm253, %v658
    %723 = vst.msk [vmem:[#allocation2 + $0x80] sm:$0xff] %vm253, %v659
    %724 = vst.msk [vmem:[#allocation2 + $0x88] sm:$0xff] %vm253, %v660
    %725 = vst.msk [vmem:[#allocation2 + $0x90] sm:$0xff] %vm253, %v661
    %726 = vst.msk [vmem:[#allocation2 + $0x98] sm:$0xff] %vm253, %v662
    %727 = vst.msk [vmem:[#allocation2 + $0xa0] sm:$0xff] %vm253, %v663
    %728 = vst.msk [vmem:[#allocation2 + $0xa8] sm:$0xff] %vm253, %v664
    %729 = vst.msk [vmem:[#allocation2 + $0xb0] sm:$0xff] %vm253, %v665
    %730 = vst.msk [vmem:[#allocation2 + $0xb8] sm:$0xff] %vm253, %v666
    %731 = vst.msk [vmem:[#allocation2 + $0xc0] sm:$0xff] %vm253, %v667
    %732 = vst.msk [vmem:[#allocation2 + $0xc8] sm:$0xff] %vm253, %v668
    %733 = vst.msk [vmem:[#allocation2 + $0xd0] sm:$0xff] %vm253, %v669
    %734 = vst.msk [vmem:[#allocation2 + $0xd8] sm:$0xff] %vm253, %v670
    %735 = vst.msk [vmem:[#allocation2 + $0xe0] sm:$0xff] %vm253, %v671
    %736 = vst.msk [vmem:[#allocation2 + $0xe8] sm:$0xff] %vm253, %v672
    %737 = vst.msk [vmem:[#allocation2 + $0xf0] sm:$0xff] %vm253, %v673
    %738 = vst.msk [vmem:[#allocation2 + $0xf8] sm:$0xff] %vm253, %v674
    %739 = vst.msk [vmem:[#allocation2 + $0x100] sm:$0xff] %vm253, %v675
    %740 = vst.msk [vmem:[#allocation2 + $0x108] sm:$0xff] %vm253, %v676
    %741 = vst.msk [vmem:[#allocation2 + $0x110] sm:$0xff] %vm253, %v677
    %742 = vst.msk [vmem:[#allocation2 + $0x118] sm:$0xff] %vm253, %v678
    %743 = vst.msk [vmem:[#allocation2 + $0x120] sm:$0xff] %vm253, %v679
    %744 = vst.msk [vmem:[#allocation2 + $0x128] sm:$0xff] %vm253, %v680
    %745 = vst.msk [vmem:[#allocation2 + $0x130] sm:$0xff] %vm253, %v681
    %746 = vst.msk [vmem:[#allocation2 + $0x138] sm:$0xff] %vm253, %v682
    %747 = vst.msk [vmem:[#allocation2 + $0x140] sm:$0xff] %vm253, %v683
    %748 = vst.msk [vmem:[#allocation2 + $0x148] sm:$0xff] %vm253, %v684
    %749 = vst.msk [vmem:[#allocation2 + $0x150] sm:$0xff] %vm253, %v685
    %750 = vst.msk [vmem:[#allocation2 + $0x158] sm:$0xff] %vm253, %v686
    %751 = vst.msk [vmem:[#allocation2 + $0x160] sm:$0xff] %vm253, %v687
    %752 = vst.msk [vmem:[#allocation2 + $0x168] sm:$0xff] %vm253, %v688
    %753 = vst.msk [vmem:[#allocation2 + $0x170] sm:$0xff] %vm253, %v689
    %754 = vst.msk [vmem:[#allocation2 + $0x178] sm:$0xff] %vm253, %v690
    %755 = vst.msk [vmem:[#allocation2 + $0x180] sm:$0xff] %vm253, %v691
    %756 = vst.msk [vmem:[#allocation2 + $0x188] sm:$0xff] %vm253, %v692
    %757 = vst.msk [vmem:[#allocation2 + $0x190] sm:$0xff] %vm253, %v693
    %758 = vst.msk [vmem:[#allocation2 + $0x198] sm:$0xff] %vm253, %v694
    %759 = vst.msk [vmem:[#allocation2 + $0x1a0] sm:$0xff] %vm253, %v695
    %760 = vst.msk [vmem:[#allocation2 + $0x1a8] sm:$0xff] %vm253, %v696
    %761 = vst.msk [vmem:[#allocation2 + $0x1b0] sm:$0xff] %vm253, %v697
    %762 = vst.msk [vmem:[#allocation2 + $0x1b8] sm:$0xff] %vm253, %v698
    %763 = vst.msk [vmem:[#allocation2 + $0x1c0] sm:$0xff] %vm253, %v699
    %764 = vst.msk [vmem:[#allocation2 + $0x1c8] sm:$0xff] %vm253, %v700
    %765 = vst.msk [vmem:[#allocation2 + $0x1d0] sm:$0xff] %vm253, %v701
    %766 = vst.msk [vmem:[#allocation2 + $0x1d8] sm:$0xff] %vm253, %v702
    %767 = vst.msk [vmem:[#allocation2 + $0x1e0] sm:$0xff] %vm253, %v703
    %768 = vst.msk [vmem:[#allocation2 + $0x1e8] sm:$0xff] %vm253, %v704
    %769 = vst.msk [vmem:[#allocation2 + $0x1f0] sm:$0xff] %vm253, %v705
    %770 = vst.msk [vmem:[#allocation2 + $0x1f8] sm:$0xff] %vm253, %v706
    // Predicated region
    $region22: #{tpu_custom_call.1} parent=1 // pred_check
      %p771 = pneg %p23
    $region23: #{tpu_custom_call.1} parent=1 // pred_check_branch
      %773 = sbr.rel (%p771) target = $region25
    $region24: #{tpu_custom_call.1} parent=1 // pred_region
      %v774 = vld [vmem:[#allocation2] sm:$0xff]
      %v775 = vld [vmem:[#allocation2 + $0x8] sm:$0xff]
      %v776 = vld [vmem:[#allocation2 + $0x10] sm:$0xff]
      %v777 = vld [vmem:[#allocation2 + $0x18] sm:$0xff]
      %v778 = vld [vmem:[#allocation2 + $0x20] sm:$0xff]
      %v779 = vld [vmem:[#allocation2 + $0x28] sm:$0xff]
      %v780 = vld [vmem:[#allocation2 + $0x30] sm:$0xff]
      %v781 = vld [vmem:[#allocation2 + $0x38] sm:$0xff]
      %v782 = vld [vmem:[#allocation2 + $0x40] sm:$0xff]
      %v783 = vld [vmem:[#allocation2 + $0x48] sm:$0xff]
      %v784 = vld [vmem:[#allocation2 + $0x50] sm:$0xff]
      %v785 = vld [vmem:[#allocation2 + $0x58] sm:$0xff]
      %v786 = vld [vmem:[#allocation2 + $0x60] sm:$0xff]
      %v787 = vld [vmem:[#allocation2 + $0x68] sm:$0xff]
      %v788 = vld [vmem:[#allocation2 + $0x70] sm:$0xff]
      %v789 = vld [vmem:[#allocation2 + $0x78] sm:$0xff]
      %v790 = vld [vmem:[#allocation2 + $0x80] sm:$0xff]
      %v791 = vld [vmem:[#allocation2 + $0x88] sm:$0xff]
      %v792 = vld [vmem:[#allocation2 + $0x90] sm:$0xff]
      %v793 = vld [vmem:[#allocation2 + $0x98] sm:$0xff]
      %v794 = vld [vmem:[#allocation2 + $0xa0] sm:$0xff]
      %v795 = vld [vmem:[#allocation2 + $0xa8] sm:$0xff]
      %v796 = vld [vmem:[#allocation2 + $0xb0] sm:$0xff]
      %v797 = vld [vmem:[#allocation2 + $0xb8] sm:$0xff]
      %v798 = vld [vmem:[#allocation2 + $0xc0] sm:$0xff]
      %v799 = vld [vmem:[#allocation2 + $0xc8] sm:$0xff]
      %v800 = vld [vmem:[#allocation2 + $0xd0] sm:$0xff]
      %v801 = vld [vmem:[#allocation2 + $0xd8] sm:$0xff]
      %v802 = vld [vmem:[#allocation2 + $0xe0] sm:$0xff]
      %v803 = vld [vmem:[#allocation2 + $0xe8] sm:$0xff]
      %v804 = vld [vmem:[#allocation2 + $0xf0] sm:$0xff]
      %v805 = vld [vmem:[#allocation2 + $0xf8] sm:$0xff]
      %v806 = vld [vmem:[#allocation2 + $0x100] sm:$0xff]
      %v807 = vld [vmem:[#allocation2 + $0x108] sm:$0xff]
      %v808 = vld [vmem:[#allocation2 + $0x110] sm:$0xff]
      %v809 = vld [vmem:[#allocation2 + $0x118] sm:$0xff]
      %v810 = vld [vmem:[#allocation2 + $0x120] sm:$0xff]
      %v811 = vld [vmem:[#allocation2 + $0x128] sm:$0xff]
      %v812 = vld [vmem:[#allocation2 + $0x130] sm:$0xff]
      %v813 = vld [vmem:[#allocation2 + $0x138] sm:$0xff]
      %v814 = vld [vmem:[#allocation2 + $0x140] sm:$0xff]
      %v815 = vld [vmem:[#allocation2 + $0x148] sm:$0xff]
      %v816 = vld [vmem:[#allocation2 + $0x150] sm:$0xff]
      %v817 = vld [vmem:[#allocation2 + $0x158] sm:$0xff]
      %v818 = vld [vmem:[#allocation2 + $0x160] sm:$0xff]
      %v819 = vld [vmem:[#allocation2 + $0x168] sm:$0xff]
      %v820 = vld [vmem:[#allocation2 + $0x170] sm:$0xff]
      %v821 = vld [vmem:[#allocation2 + $0x178] sm:$0xff]
      %v822 = vld [vmem:[#allocation2 + $0x180] sm:$0xff]
      %v823 = vld [vmem:[#allocation2 + $0x188] sm:$0xff]
      %v824 = vld [vmem:[#allocation2 + $0x190] sm:$0xff]
      %v825 = vld [vmem:[#allocation2 + $0x198] sm:$0xff]
      %v826 = vld [vmem:[#allocation2 + $0x1a0] sm:$0xff]
      %v827 = vld [vmem:[#allocation2 + $0x1a8] sm:$0xff]
      %v828 = vld [vmem:[#allocation2 + $0x1b0] sm:$0xff]
      %v829 = vld [vmem:[#allocation2 + $0x1b8] sm:$0xff]
      %v830 = vld [vmem:[#allocation2 + $0x1c0] sm:$0xff]
      %v831 = vld [vmem:[#allocation2 + $0x1c8] sm:$0xff]
      %v832 = vld [vmem:[#allocation2 + $0x1d0] sm:$0xff]
      %v833 = vld [vmem:[#allocation2 + $0x1d8] sm:$0xff]
      %v834 = vld [vmem:[#allocation2 + $0x1e0] sm:$0xff]
      %v835 = vld [vmem:[#allocation2 + $0x1e8] sm:$0xff]
      %v836 = vld [vmem:[#allocation2 + $0x1f0] sm:$0xff]
      %v837 = vld [vmem:[#allocation2 + $0x1f8] sm:$0xff]
      %838 = vst.msk [vmem:[%s4] sm:$0xff] %vm253, %v774
      %839 = vst.msk [vmem:[%s4 + $0x8] sm:$0xff] %vm253, %v775
      %840 = vst.msk [vmem:[%s4 + $0x10] sm:$0xff] %vm253, %v776
      %841 = vst.msk [vmem:[%s4 + $0x18] sm:$0xff] %vm253, %v777
      %842 = vst.msk [vmem:[%s4 + $0x20] sm:$0xff] %vm253, %v778
      %843 = vst.msk [vmem:[%s4 + $0x28] sm:$0xff] %vm253, %v779
      %844 = vst.msk [vmem:[%s4 + $0x30] sm:$0xff] %vm253, %v780
      %845 = vst.msk [vmem:[%s4 + $0x38] sm:$0xff] %vm253, %v781
      %846 = vst.msk [vmem:[%s4 + $0x40] sm:$0xff] %vm253, %v782
      %847 = vst.msk [vmem:[%s4 + $0x48] sm:$0xff] %vm253, %v783
      %848 = vst.msk [vmem:[%s4 + $0x50] sm:$0xff] %vm253, %v784
      %849 = vst.msk [vmem:[%s4 + $0x58] sm:$0xff] %vm253, %v785
      %850 = vst.msk [vmem:[%s4 + $0x60] sm:$0xff] %vm253, %v786
      %851 = vst.msk [vmem:[%s4 + $0x68] sm:$0xff] %vm253, %v787
      %852 = vst.msk [vmem:[%s4 + $0x70] sm:$0xff] %vm253, %v788
      %853 = vst.msk [vmem:[%s4 + $0x78] sm:$0xff] %vm253, %v789
      %854 = vst.msk [vmem:[%s4 + $0x80] sm:$0xff] %vm253, %v790
      %855 = vst.msk [vmem:[%s4 + $0x88] sm:$0xff] %vm253, %v791
      %856 = vst.msk [vmem:[%s4 + $0x90] sm:$0xff] %vm253, %v792
      %857 = vst.msk [vmem:[%s4 + $0x98] sm:$0xff] %vm253, %v793
      %858 = vst.msk [vmem:[%s4 + $0xa0] sm:$0xff] %vm253, %v794
      %859 = vst.msk [vmem:[%s4 + $0xa8] sm:$0xff] %vm253, %v795
      %860 = vst.msk [vmem:[%s4 + $0xb0] sm:$0xff] %vm253, %v796
      %861 = vst.msk [vmem:[%s4 + $0xb8] sm:$0xff] %vm253, %v797
      %862 = vst.msk [vmem:[%s4 + $0xc0] sm:$0xff] %vm253, %v798
      %863 = vst.msk [vmem:[%s4 + $0xc8] sm:$0xff] %vm253, %v799
      %864 = vst.msk [vmem:[%s4 + $0xd0] sm:$0xff] %vm253, %v800
      %865 = vst.msk [vmem:[%s4 + $0xd8] sm:$0xff] %vm253, %v801
      %866 = vst.msk [vmem:[%s4 + $0xe0] sm:$0xff] %vm253, %v802
      %867 = vst.msk [vmem:[%s4 + $0xe8] sm:$0xff] %vm253, %v803
      %868 = vst.msk [vmem:[%s4 + $0xf0] sm:$0xff] %vm253, %v804
      %869 = vst.msk [vmem:[%s4 + $0xf8] sm:$0xff] %vm253, %v805
      %870 = vst.msk [vmem:[%s4 + $0x100] sm:$0xff] %vm253, %v806
      %871 = vst.msk [vmem:[%s4 + $0x108] sm:$0xff] %vm253, %v807
      %872 = vst.msk [vmem:[%s4 + $0x110] sm:$0xff] %vm253, %v808
      %873 = vst.msk [vmem:[%s4 + $0x118] sm:$0xff] %vm253, %v809
      %874 = vst.msk [vmem:[%s4 + $0x120] sm:$0xff] %vm253, %v810
      %875 = vst.msk [vmem:[%s4 + $0x128] sm:$0xff] %vm253, %v811
      %876 = vst.msk [vmem:[%s4 + $0x130] sm:$0xff] %vm253, %v812
      %877 = vst.msk [vmem:[%s4 + $0x138] sm:$0xff] %vm253, %v813
      %878 = vst.msk [vmem:[%s4 + $0x140] sm:$0xff] %vm253, %v814
      %879 = vst.msk [vmem:[%s4 + $0x148] sm:$0xff] %vm253, %v815
      %880 = vst.msk [vmem:[%s4 + $0x150] sm:$0xff] %vm253, %v816
      %881 = vst.msk [vmem:[%s4 + $0x158] sm:$0xff] %vm253, %v817
      %882 = vst.msk [vmem:[%s4 + $0x160] sm:$0xff] %vm253, %v818
      %883 = vst.msk [vmem:[%s4 + $0x168] sm:$0xff] %vm253, %v819
      %884 = vst.msk [vmem:[%s4 + $0x170] sm:$0xff] %vm253, %v820
      %885 = vst.msk [vmem:[%s4 + $0x178] sm:$0xff] %vm253, %v821
      %886 = vst.msk [vmem:[%s4 + $0x180] sm:$0xff] %vm253, %v822
      %887 = vst.msk [vmem:[%s4 + $0x188] sm:$0xff] %vm253, %v823
      %888 = vst.msk [vmem:[%s4 + $0x190] sm:$0xff] %vm253, %v824
      %889 = vst.msk [vmem:[%s4 + $0x198] sm:$0xff] %vm253, %v825
      %890 = vst.msk [vmem:[%s4 + $0x1a0] sm:$0xff] %vm253, %v826
      %891 = vst.msk [vmem:[%s4 + $0x1a8] sm:$0xff] %vm253, %v827
      %892 = vst.msk [vmem:[%s4 + $0x1b0] sm:$0xff] %vm253, %v828
      %893 = vst.msk [vmem:[%s4 + $0x1b8] sm:$0xff] %vm253, %v829
      %894 = vst.msk [vmem:[%s4 + $0x1c0] sm:$0xff] %vm253, %v830
      %895 = vst.msk [vmem:[%s4 + $0x1c8] sm:$0xff] %vm253, %v831
      %896 = vst.msk [vmem:[%s4 + $0x1d0] sm:$0xff] %vm253, %v832
      %897 = vst.msk [vmem:[%s4 + $0x1d8] sm:$0xff] %vm253, %v833
      %898 = vst.msk [vmem:[%s4 + $0x1e0] sm:$0xff] %vm253, %v834
      %899 = vst.msk [vmem:[%s4 + $0x1e8] sm:$0xff] %vm253, %v835
      %900 = vst.msk [vmem:[%s4 + $0x1f0] sm:$0xff] %vm253, %v836
      %901 = vst.msk [vmem:[%s4 + $0x1f8] sm:$0xff] %vm253, %v837
      %v902 = vsel %vm253, %v774, 0.0
      %v903 = vsel %vm253, %v775, 0.0
      %v904 = vadd.f32 %v902, %v903
      %v905 = vsel %vm253, %v776, 0.0
      %v906 = vadd.f32 %v904, %v905
      %v907 = vsel %vm253, %v777, 0.0
      %v908 = vadd.f32 %v906, %v907
      %v909 = vsel %vm253, %v778, 0.0
      %v910 = vadd.f32 %v908, %v909
      %v911 = vsel %vm253, %v779, 0.0
      %v912 = vadd.f32 %v910, %v911
      %v913 = vsel %vm253, %v780, 0.0
      %v914 = vadd.f32 %v912, %v913
      %v915 = vsel %vm253, %v781, 0.0
      %v916 = vadd.f32 %v914, %v915
      %v917 = vsel %vm253, %v782, 0.0
      %v918 = vadd.f32 %v916, %v917
      %v919 = vsel %vm253, %v783, 0.0
      %v920 = vadd.f32 %v918, %v919
      %v921 = vsel %vm253, %v784, 0.0
      %v922 = vadd.f32 %v920, %v921
      %v923 = vsel %vm253, %v785, 0.0
      %v924 = vadd.f32 %v922, %v923
      %v925 = vsel %vm253, %v786, 0.0
      %v926 = vadd.f32 %v924, %v925
      %v927 = vsel %vm253, %v787, 0.0
      %v928 = vadd.f32 %v926, %v927
      %v929 = vsel %vm253, %v788, 0.0
      %v930 = vadd.f32 %v928, %v929
      %v931 = vsel %vm253, %v789, 0.0
      %v932 = vadd.f32 %v930, %v931
      %v933 = vsel %vm253, %v790, 0.0
      %v934 = vadd.f32 %v932, %v933
      %v935 = vsel %vm253, %v791, 0.0
      %v936 = vadd.f32 %v934, %v935
      %v937 = vsel %vm253, %v792, 0.0
      %v938 = vadd.f32 %v936, %v937
      %v939 = vsel %vm253, %v793, 0.0
      %v940 = vadd.f32 %v938, %v939
      %v941 = vsel %vm253, %v794, 0.0
      %v942 = vadd.f32 %v940, %v941
      %v943 = vsel %vm253, %v795, 0.0
      %v944 = vadd.f32 %v942, %v943
      %v945 = vsel %vm253, %v796, 0.0
      %v946 = vadd.f32 %v944, %v945
      %v947 = vsel %vm253, %v797, 0.0
      %v948 = vadd.f32 %v946, %v947
      %v949 = vsel %vm253, %v798, 0.0
      %v950 = vadd.f32 %v948, %v949
      %v951 = vsel %vm253, %v799, 0.0
      %v952 = vadd.f32 %v950, %v951
      %v953 = vsel %vm253, %v800, 0.0
      %v954 = vadd.f32 %v952, %v953
      %v955 = vsel %vm253, %v801, 0.0
      %v956 = vadd.f32 %v954, %v955
      %v957 = vsel %vm253, %v802, 0.0
      %v958 = vadd.f32 %v956, %v957
      %v959 = vsel %vm253, %v803, 0.0
      %v960 = vadd.f32 %v958, %v959
      %v961 = vsel %vm253, %v804, 0.0
      %v962 = vadd.f32 %v960, %v961
      %v963 = vsel %vm253, %v805, 0.0
      %v964 = vadd.f32 %v962, %v963
      %v965 = vsel %vm253, %v806, 0.0
      %v966 = vadd.f32 %v964, %v965
      %v967 = vsel %vm253, %v807, 0.0
      %v968 = vadd.f32 %v966, %v967
      %v969 = vsel %vm253, %v808, 0.0
      %v970 = vadd.f32 %v968, %v969
      %v971 = vsel %vm253, %v809, 0.0
      %v972 = vadd.f32 %v970, %v971
      %v973 = vsel %vm253, %v810, 0.0
      %v974 = vadd.f32 %v972, %v973
      %v975 = vsel %vm253, %v811, 0.0
      %v976 = vadd.f32 %v974, %v975
      %v977 = vsel %vm253, %v812, 0.0
      %v978 = vadd.f32 %v976, %v977
      %v979 = vsel %vm253, %v813, 0.0
      %v980 = vadd.f32 %v978, %v979
      %v981 = vsel %vm253, %v814, 0.0
      %v982 = vadd.f32 %v980, %v981
      %v983 = vsel %vm253, %v815, 0.0
      %v984 = vadd.f32 %v982, %v983
      %v985 = vsel %vm253, %v816, 0.0
      %v986 = vadd.f32 %v984, %v985
      %v987 = vsel %vm253, %v817, 0.0
      %v988 = vadd.f32 %v986, %v987
      %v989 = vsel %vm253, %v818, 0.0
      %v990 = vadd.f32 %v988, %v989
      %v991 = vsel %vm253, %v819, 0.0
      %v992 = vadd.f32 %v990, %v991
      %v993 = vsel %vm253, %v820, 0.0
      %v994 = vadd.f32 %v992, %v993
      %v995 = vsel %vm253, %v821, 0.0
      %v996 = vadd.f32 %v994, %v995
      %v997 = vsel %vm253, %v822, 0.0
      %v998 = vadd.f32 %v996, %v997
      %v999 = vsel %vm253, %v823, 0.0
      %v1000 = vadd.f32 %v998, %v999
      %v1001 = vsel %vm253, %v824, 0.0
      %v1002 = vadd.f32 %v1000, %v1001
      %v1003 = vsel %vm253, %v825, 0.0
      %v1004 = vadd.f32 %v1002, %v1003
      %v1005 = vsel %vm253, %v826, 0.0
      %v1006 = vadd.f32 %v1004, %v1005
      %v1007 = vsel %vm253, %v827, 0.0
      %v1008 = vadd.f32 %v1006, %v1007
      %v1009 = vsel %vm253, %v828, 0.0
      %v1010 = vadd.f32 %v1008, %v1009
      %v1011 = vsel %vm253, %v829, 0.0
      %v1012 = vadd.f32 %v1010, %v1011
      %v1013 = vsel %vm253, %v830, 0.0
      %v1014 = vadd.f32 %v1012, %v1013
      %v1015 = vsel %vm253, %v831, 0.0
      %v1016 = vadd.f32 %v1014, %v1015
      %v1017 = vsel %vm253, %v832, 0.0
      %v1018 = vadd.f32 %v1016, %v1017
      %v1019 = vsel %vm253, %v833, 0.0
      %v1020 = vadd.f32 %v1018, %v1019
      %v1021 = vsel %vm253, %v834, 0.0
      %v1022 = vadd.f32 %v1020, %v1021
      %v1023 = vsel %vm253, %v835, 0.0
      %v1024 = vadd.f32 %v1022, %v1023
      %v1025 = vsel %vm253, %v836, 0.0
      %v1026 = vadd.f32 %v1024, %v1025
      %v1027 = vsel %vm253, %v837, 0.0
      %v1028 = vadd.f32 %v1026, %v1027
      %v1029 = vrot.slane %v1028, 4
      %v1030 = vadd.f32 %v1028, %v1029
      %v1031 = vrot.slane %v1030, 2
      %v1032 = vadd.f32 %v1030, %v1031
      %v1033 = vrot.slane %v1032, 1
      %v1034 = vadd.f32 %v1032, %v1033
      %vm1035 = vcmask 24576
      %1036 = vst.msk [vmem:[#allocation3] sm:$0x1] %vm1035, %v1034
      %v1037 = vmul.f32 %v774, %v774
      %v1038 = vmul.f32 %v775, %v775
      %v1039 = vmul.f32 %v776, %v776
      %v1040 = vmul.f32 %v777, %v777
      %v1041 = vmul.f32 %v778, %v778
      %v1042 = vmul.f32 %v779, %v779
      %v1043 = vmul.f32 %v780, %v780
      %v1044 = vmul.f32 %v781, %v781
      %v1045 = vmul.f32 %v782, %v782
      %v1046 = vmul.f32 %v783, %v783
      %v1047 = vmul.f32 %v784, %v784
      %v1048 = vmul.f32 %v785, %v785
      %v1049 = vmul.f32 %v786, %v786
      %v1050 = vmul.f32 %v787, %v787
      %v1051 = vmul.f32 %v788, %v788
      %v1052 = vmul.f32 %v789, %v789
      %v1053 = vmul.f32 %v790, %v790
      %v1054 = vmul.f32 %v791, %v791
      %v1055 = vmul.f32 %v792, %v792
      %v1056 = vmul.f32 %v793, %v793
      %v1057 = vmul.f32 %v794, %v794
      %v1058 = vmul.f32 %v795, %v795
      %v1059 = vmul.f32 %v796, %v796
      %v1060 = vmul.f32 %v797, %v797
      %v1061 = vmul.f32 %v798, %v798
      %v1062 = vmul.f32 %v799, %v799
      %v1063 = vmul.f32 %v800, %v800
      %v1064 = vmul.f32 %v801, %v801
      %v1065 = vmul.f32 %v802, %v802
      %v1066 = vmul.f32 %v803, %v803
      %v1067 = vmul.f32 %v804, %v804
      %v1068 = vmul.f32 %v805, %v805
      %v1069 = vmul.f32 %v806, %v806
      %v1070 = vmul.f32 %v807, %v807
      %v1071 = vmul.f32 %v808, %v808
      %v1072 = vmul.f32 %v809, %v809
      %v1073 = vmul.f32 %v810, %v810
      %v1074 = vmul.f32 %v811, %v811
      %v1075 = vmul.f32 %v812, %v812
      %v1076 = vmul.f32 %v813, %v813
      %v1077 = vmul.f32 %v814, %v814
      %v1078 = vmul.f32 %v815, %v815
      %v1079 = vmul.f32 %v816, %v816
      %v1080 = vmul.f32 %v817, %v817
      %v1081 = vmul.f32 %v818, %v818
      %v1082 = vmul.f32 %v819, %v819
      %v1083 = vmul.f32 %v820, %v820
      %v1084 = vmul.f32 %v821, %v821
      %v1085 = vmul.f32 %v822, %v822
      %v1086 = vmul.f32 %v823, %v823
      %v1087 = vmul.f32 %v824, %v824
      %v1088 = vmul.f32 %v825, %v825
      %v1089 = vmul.f32 %v826, %v826
      %v1090 = vmul.f32 %v827, %v827
      %v1091 = vmul.f32 %v828, %v828
      %v1092 = vmul.f32 %v829, %v829
      %v1093 = vmul.f32 %v830, %v830
      %v1094 = vmul.f32 %v831, %v831
      %v1095 = vmul.f32 %v832, %v832
      %v1096 = vmul.f32 %v833, %v833
      %v1097 = vmul.f32 %v834, %v834
      %v1098 = vmul.f32 %v835, %v835
      %v1099 = vmul.f32 %v836, %v836
      %v1100 = vmul.f32 %v837, %v837
      %v1101 = vsel %vm253, %v1037, 0.0
      %v1102 = vsel %vm253, %v1038, 0.0
      %v1103 = vadd.f32 %v1101, %v1102
      %v1104 = vsel %vm253, %v1039, 0.0
      %v1105 = vadd.f32 %v1103, %v1104
      %v1106 = vsel %vm253, %v1040, 0.0
      %v1107 = vadd.f32 %v1105, %v1106
      %v1108 = vsel %vm253, %v1041, 0.0
      %v1109 = vadd.f32 %v1107, %v1108
      %v1110 = vsel %vm253, %v1042, 0.0
      %v1111 = vadd.f32 %v1109, %v1110
      %v1112 = vsel %vm253, %v1043, 0.0
      %v1113 = vadd.f32 %v1111, %v1112
      %v1114 = vsel %vm253, %v1044, 0.0
      %v1115 = vadd.f32 %v1113, %v1114
      %v1116 = vsel %vm253, %v1045, 0.0
      %v1117 = vadd.f32 %v1115, %v1116
      %v1118 = vsel %vm253, %v1046, 0.0
      %v1119 = vadd.f32 %v1117, %v1118
      %v1120 = vsel %vm253, %v1047, 0.0
      %v1121 = vadd.f32 %v1119, %v1120
      %v1122 = vsel %vm253, %v1048, 0.0
      %v1123 = vadd.f32 %v1121, %v1122
      %v1124 = vsel %vm253, %v1049, 0.0
      %v1125 = vadd.f32 %v1123, %v1124
      %v1126 = vsel %vm253, %v1050, 0.0
      %v1127 = vadd.f32 %v1125, %v1126
      %v1128 = vsel %vm253, %v1051, 0.0
      %v1129 = vadd.f32 %v1127, %v1128
      %v1130 = vsel %vm253, %v1052, 0.0
      %v1131 = vadd.f32 %v1129, %v1130
      %v1132 = vsel %vm253, %v1053, 0.0
      %v1133 = vadd.f32 %v1131, %v1132
      %v1134 = vsel %vm253, %v1054, 0.0
      %v1135 = vadd.f32 %v1133, %v1134
      %v1136 = vsel %vm253, %v1055, 0.0
      %v1137 = vadd.f32 %v1135, %v1136
      %v1138 = vsel %vm253, %v1056, 0.0
      %v1139 = vadd.f32 %v1137, %v1138
      %v1140 = vsel %vm253, %v1057, 0.0
      %v1141 = vadd.f32 %v1139, %v1140
      %v1142 = vsel %vm253, %v1058, 0.0
      %v1143 = vadd.f32 %v1141, %v1142
      %v1144 = vsel %vm253, %v1059, 0.0
      %v1145 = vadd.f32 %v1143, %v1144
      %v1146 = vsel %vm253, %v1060, 0.0
      %v1147 = vadd.f32 %v1145, %v1146
      %v1148 = vsel %vm253, %v1061, 0.0
      %v1149 = vadd.f32 %v1147, %v1148
      %v1150 = vsel %vm253, %v1062, 0.0
      %v1151 = vadd.f32 %v1149, %v1150
      %v1152 = vsel %vm253, %v1063, 0.0
      %v1153 = vadd.f32 %v1151, %v1152
      %v1154 = vsel %vm253, %v1064, 0.0
      %v1155 = vadd.f32 %v1153, %v1154
      %v1156 = vsel %vm253, %v1065, 0.0
      %v1157 = vadd.f32 %v1155, %v1156
      %v1158 = vsel %vm253, %v1066, 0.0
      %v1159 = vadd.f32 %v1157, %v1158
      %v1160 = vsel %vm253, %v1067, 0.0
      %v1161 = vadd.f32 %v1159, %v1160
      %v1162 = vsel %vm253, %v1068, 0.0
      %v1163 = vadd.f32 %v1161, %v1162
      %v1164 = vsel %vm253, %v1069, 0.0
      %v1165 = vadd.f32 %v1163, %v1164
      %v1166 = vsel %vm253, %v1070, 0.0
      %v1167 = vadd.f32 %v1165, %v1166
      %v1168 = vsel %vm253, %v1071, 0.0
      %v1169 = vadd.f32 %v1167, %v1168
      %v1170 = vsel %vm253, %v1072, 0.0
      %v1171 = vadd.f32 %v1169, %v1170
      %v1172 = vsel %vm253, %v1073, 0.0
      %v1173 = vadd.f32 %v1171, %v1172
      %v1174 = vsel %vm253, %v1074, 0.0
      %v1175 = vadd.f32 %v1173, %v1174
      %v1176 = vsel %vm253, %v1075, 0.0
      %v1177 = vadd.f32 %v1175, %v1176
      %v1178 = vsel %vm253, %v1076, 0.0
      %v1179 = vadd.f32 %v1177, %v1178
      %v1180 = vsel %vm253, %v1077, 0.0
      %v1181 = vadd.f32 %v1179, %v1180
      %v1182 = vsel %vm253, %v1078, 0.0
      %v1183 = vadd.f32 %v1181, %v1182
      %v1184 = vsel %vm253, %v1079, 0.0
      %v1185 = vadd.f32 %v1183, %v1184
      %v1186 = vsel %vm253, %v1080, 0.0
      %v1187 = vadd.f32 %v1185, %v1186
      %v1188 = vsel %vm253, %v1081, 0.0
      %v1189 = vadd.f32 %v1187, %v1188
      %v1190 = vsel %vm253, %v1082, 0.0
      %v1191 = vadd.f32 %v1189, %v1190
      %v1192 = vsel %vm253, %v1083, 0.0
      %v1193 = vadd.f32 %v1191, %v1192
      %v1194 = vsel %vm253, %v1084, 0.0
      %v1195 = vadd.f32 %v1193, %v1194
      %v1196 = vsel %vm253, %v1085, 0.0
      %v1197 = vadd.f32 %v1195, %v1196
      %v1198 = vsel %vm253, %v1086, 0.0
      %v1199 = vadd.f32 %v1197, %v1198
      %v1200 = vsel %vm253, %v1087, 0.0
      %v1201 = vadd.f32 %v1199, %v1200
      %v1202 = vsel %vm253, %v1088, 0.0
      %v1203 = vadd.f32 %v1201, %v1202
      %v1204 = vsel %vm253, %v1089, 0.0
      %v1205 = vadd.f32 %v1203, %v1204
      %v1206 = vsel %vm253, %v1090, 0.0
      %v1207 = vadd.f32 %v1205, %v1206
      %v1208 = vsel %vm253, %v1091, 0.0
      %v1209 = vadd.f32 %v1207, %v1208
      %v1210 = vsel %vm253, %v1092, 0.0
      %v1211 = vadd.f32 %v1209, %v1210
      %v1212 = vsel %vm253, %v1093, 0.0
      %v1213 = vadd.f32 %v1211, %v1212
      %v1214 = vsel %vm253, %v1094, 0.0
      %v1215 = vadd.f32 %v1213, %v1214
      %v1216 = vsel %vm253, %v1095, 0.0
      %v1217 = vadd.f32 %v1215, %v1216
      %v1218 = vsel %vm253, %v1096, 0.0
      %v1219 = vadd.f32 %v1217, %v1218
      %v1220 = vsel %vm253, %v1097, 0.0
      %v1221 = vadd.f32 %v1219, %v1220
      %v1222 = vsel %vm253, %v1098, 0.0
      %v1223 = vadd.f32 %v1221, %v1222
      %v1224 = vsel %vm253, %v1099, 0.0
      %v1225 = vadd.f32 %v1223, %v1224
      %v1226 = vsel %vm253, %v1100, 0.0
      %v1227 = vadd.f32 %v1225, %v1226
      %v1228 = vrot.slane %v1227, 4
      %v1229 = vadd.f32 %v1227, %v1228
      %v1230 = vrot.slane %v1229, 2
      %v1231 = vadd.f32 %v1229, %v1230
      %v1232 = vrot.slane %v1231, 1
      %v1233 = vadd.f32 %v1231, %v1232
      %1234 = vst.msk [vmem:[#allocation5] sm:$0x1] %vm1035, %v1233
    $region25: #{tpu_custom_call.1} parent=1 // pred_fallthru
      _
    // Predicated region
    $region26: #{tpu_custom_call.1} parent=1 // pred_check
      _
    $region27: #{tpu_custom_call.1} parent=1 // pred_check_branch
      %1236 = sbr.rel (0) target = $region29
    $region28: #{tpu_custom_call.1} parent=1 // pred_region
      _
    $region29: #{tpu_custom_call.1} parent=1 // pred_fallthru
      _
    // Predicated region
    $region30: #{tpu_custom_call.1} parent=1 // pred_check
      _
    $region31: #{tpu_custom_call.1} parent=1 // pred_check_branch
      %1238 = sbr.rel (0) target = $region33
    $region32: #{tpu_custom_call.1} parent=1 // pred_region
      %s1240 = ssub.s32 16, 16
      %1241 = vsyncadd [#allocation4], %s1240
      %s1243 = sshll.u32 [#allocation3], 4
      %s1244 = int_to_ptr.vmem [resolvable:$true] %s1243
      %1246 = dma.vmem_to_hbm [thread:$0]  %s1244, 16, %s5, [#allocation4]
    $region33: #{tpu_custom_call.1} parent=1 // pred_fallthru
      _
    // Predicated region
    $region34: #{tpu_custom_call.1} parent=1 // pred_check
      _
    $region35: #{tpu_custom_call.1} parent=1 // pred_check_branch
      %1248 = sbr.rel (0) target = $region37
    $region36: #{tpu_custom_call.1} parent=1 // pred_region
      %s1250 = ssub.s32 16, 16
      %1251 = vsyncadd [#allocation6], %s1250
      %s1253 = sshll.u32 [#allocation5], 4
      %s1254 = int_to_ptr.vmem [resolvable:$true] %s1253
      %1256 = dma.vmem_to_hbm [thread:$0]  %s1254, 16, %s6, [#allocation6]
    $region37: #{tpu_custom_call.1} parent=1 // pred_fallthru
      _
    // Predicated region
    $region38: #{tpu_custom_call.1} parent=1 // pred_check
      _
    $region39: #{tpu_custom_call.1} parent=1 // pred_check_branch
      %1258 = sbr.rel (0) target = $region41
    $region40: #{tpu_custom_call.1} parent=1 // pred_region
      _
    $region41: #{tpu_custom_call.1} parent=1 // pred_fallthru
      _
    // Predicated region
    $region42: #{tpu_custom_call.1} parent=1 // pred_check
      _
    $region43: #{tpu_custom_call.1} parent=1 // pred_check_branch
      %1260 = sbr.rel (0) target = $region45
    $region44: #{tpu_custom_call.1} parent=1 // pred_region
      %1261 = dma.done [#allocation4], 16
    $region45: #{tpu_custom_call.1} parent=1 // pred_fallthru
      _
    // Predicated region
    $region46: #{tpu_custom_call.1} parent=1 // pred_check
      _
    $region47: #{tpu_custom_call.1} parent=1 // pred_check_branch
      %1263 = sbr.rel (0) target = $region49
    $region48: #{tpu_custom_call.1} parent=1 // pred_region
      %1264 = dma.done [#allocation6], 16
    $region49: #{tpu_custom_call.1} parent=1 // pred_fallthru
      _
    %1265 = vsyncpa [#allocation4], 1
    %1266 = vsyncpa [#allocation6], 1

</llo_original>
